<compile_context>
chip_gen: v7x
topology: tpu7x:2x2x1
jax: 0.10.0
libtpu: 0.0.40
codegen_flags: <defaults>
</compile_context>

<pallas_src>
import functools

import jax
import jax.numpy as jnp
from jax import lax
from jax.experimental import pallas as pl
from jax.experimental.pallas import tpu as pltpu

_SUBLANE = 8
_LANE = 128


def _round_up(x, m):
    return (x + m - 1) // m * m


# ----------------------------- Pallas kernel ------------------------------ #
def _decoder_kernel(x_ref, wih_ref, whh_ref, b_ref, wfc_ref, bfc_ref,
                    out_ref, h_all_sc, *, seq_len, batch_p, hidden):
    """Whole sequence in one invocation.

    x_ref   : (T*Bp, E)   time-major, batch-padded inputs (feature + embeddings)
    wih_ref : (E, 4H)     input->gates weights (pre-transposed)
    whh_ref : (H, 4H)     hidden->gates weights (pre-transposed)
    b_ref   : (1, 4H)     b_ih + b_hh
    wfc_ref : (H, Vp)     fc weights (pre-transposed, vocab lane-padded)
    bfc_ref : (1, Vp)     fc bias (vocab lane-padded)
    out_ref : (T*Bp, Vp)  logits, lane-dense
    h_all_sc: (T*Bp, H)   VMEM scratch holding every step's hidden state
    """
    T, B, H = seq_len, batch_p, hidden

    x = x_ref[...]                                                 # (T*B, E)
    # Hoisted input projection (+ bias): one batched MXU matmul, M = T*B.
    gates_x = (jnp.dot(x, wih_ref[...], preferred_element_type=jnp.float32)
               + b_ref[...])                                       # (T*B, 4H)

    whh = whh_ref[...]                                             # (H, 4H)

    h = jnp.zeros((B, H), jnp.float32)
    c = jnp.zeros((B, H), jnp.float32)
    # Fully unrolled serial recurrence; only h @ W_hh^T is on the serial chain.
    for t in range(T):
        g = gates_x[t * B:(t + 1) * B, :] + jnp.dot(
            h, whh, preferred_element_type=jnp.float32)            # (B, 4H)
        # PyTorch gate order: i, f, g, o
        i_g = jax.nn.sigmoid(g[:, 0 * H:1 * H])
        f_g = jax.nn.sigmoid(g[:, 1 * H:2 * H])
        g_g = jnp.tanh(g[:, 2 * H:3 * H])
        o_g = jax.nn.sigmoid(g[:, 3 * H:4 * H])
        c = f_g * c + i_g * g_g
        h = o_g * jnp.tanh(c)
        h_all_sc[t * B:(t + 1) * B, :] = h                          # static slice

    # Batched output projection: one matmul, lane-dense (Vp % 128 == 0) store.
    out_ref[...] = (jnp.dot(h_all_sc[...], wfc_ref[...],
                            preferred_element_type=jnp.float32)
                    + bfc_ref[...]).astype(out_ref.dtype)


def _lstm_fc_pallas(x_flat, w_ih_t, w_hh_t, b, w_fc_t, b_fc, *, seq_len, batch_p):
    """x_flat: (T*Bp, E) f32  ->  (T*Bp, Vp) f32 logits."""
    TB, E = x_flat.shape
    H = w_hh_t.shape[0]
    Vp = w_fc_t.shape[1]

    kernel = functools.partial(_decoder_kernel, seq_len=seq_len,
                               batch_p=batch_p, hidden=H)

    flops = (2 * TB * E * 4 * H          # batched input projection
             + 2 * TB * H * 4 * H        # recurrent h @ W_hh^T matmuls
             + 2 * TB * H * Vp           # batched fc projection
             + 10 * TB * H)              # elementwise gate math
    transcendentals = 5 * TB * H         # 3 sigmoid + 2 tanh per hidden element
    bytes_accessed = 4 * (x_flat.size + w_ih_t.size + w_hh_t.size + b.size
                          + w_fc_t.size + b_fc.size + TB * Vp)

    vmem = pl.BlockSpec(memory_space=pltpu.MemorySpace.VMEM)
    return pl.pallas_call(
        kernel,
        out_shape=jax.ShapeDtypeStruct((TB, Vp), jnp.float32),
        in_specs=[vmem] * 6,
        out_specs=vmem,
        scratch_shapes=[pltpu.VMEM((TB, H), jnp.float32)],
        cost_estimate=pl.CostEstimate(flops=flops,
                                      transcendentals=transcendentals,
                                      bytes_accessed=bytes_accessed),
    )(x_flat, w_ih_t, w_hh_t, b, w_fc_t, b_fc)


# ------------------------------ model wrapper ------------------------------ #
def init_decoder_params(key, embed_size, hidden_size, vocab_size):
    k = jax.random.split(key, 6)
    s_lstm = 1.0 / jnp.sqrt(hidden_size)
    s_fc = 1.0 / jnp.sqrt(hidden_size)
    return {
        # nn.Embedding(vocab, embed): N(0, 1)
        "embedding": jax.random.normal(k[0], (vocab_size, embed_size), jnp.float32),
        # nn.LSTM weights (gate order i, f, g, o): U(-1/sqrt(H), 1/sqrt(H))
        "w_ih": jax.random.uniform(k[1], (4 * hidden_size, embed_size),
                                   jnp.float32, -s_lstm, s_lstm),
        "w_hh": jax.random.uniform(k[2], (4 * hidden_size, hidden_size),
                                   jnp.float32, -s_lstm, s_lstm),
        "b_ih": jax.random.uniform(k[3], (4 * hidden_size,),
                                   jnp.float32, -s_lstm, s_lstm),
        "b_hh": jax.random.uniform(k[4], (4 * hidden_size,),
                                   jnp.float32, -s_lstm, s_lstm),
        # nn.Linear(hidden, vocab)
        "fc_w": jax.random.uniform(k[5], (vocab_size, hidden_size),
                                   jnp.float32, -s_fc, s_fc),
        "fc_b": jnp.zeros((vocab_size,), jnp.float32),
    }


def decoder_rnn_forward(params, features, captions):
    """features: (B, E) f32, captions: (B, L) int32  ->  (B, L, V) f32."""
    emb = jnp.take(params["embedding"], captions[:, :-1], axis=0)    # (B, L-1, E)
    x = jnp.concatenate([features[:, None, :], emb], axis=1)         # (B, T, E)
    x = x.astype(jnp.float32)
    B, T, E = x.shape
    H = params["w_hh"].shape[1]
    V = params["fc_w"].shape[0]

    Bp = _round_up(B, _SUBLANE)          # sublane-pad batch (2 -> 8)
    Vp = _round_up(V, _LANE)             # lane-pad vocab   (40 -> 128)

    # Time-major, batch-padded, flattened to (T*Bp, E) so the input projection
    # and the fc projection are single well-shaped matmuls inside the kernel.
    x_tbe = jnp.transpose(x, (1, 0, 2))                               # (T, B, E)
    x_tbe = jnp.pad(x_tbe, ((0, 0), (0, Bp - B), (0, 0)))             # (T, Bp, E)
    x_flat = x_tbe.reshape(T * Bp, E)

    w_ih_t = params["w_ih"].T                                         # (E, 4H)
    w_hh_t = params["w_hh"].T                                         # (H, 4H)
    b = (params["b_ih"] + params["b_hh"])[None, :]                    # (1, 4H)
    w_fc_t = jnp.pad(params["fc_w"].T, ((0, 0), (0, Vp - V)))         # (H, Vp), zero cols
    b_fc = jnp.pad(params["fc_b"], (0, Vp - V))[None, :]              # (1, Vp), zero pad

    out_flat = _lstm_fc_pallas(x_flat, w_ih_t, w_hh_t, b, w_fc_t, b_fc,
                               seq_len=T, batch_p=Bp)                 # (T*Bp, Vp)
    out = out_flat.reshape(T, Bp, Vp)[:, :B, :V]                      # drop padding
    return jnp.transpose(out, (1, 0, 2))                              # (B, T, V)


def decoder_rnn_reference(params, features, captions):
    """Pure-JAX reference (lax.scan LSTM) for correctness checking."""
    emb = jnp.take(params["embedding"], captions[:, :-1], axis=0)
    x = jnp.concatenate([features[:, None, :], emb], axis=1)          # (B, T, E)
    B = x.shape[0]
    H = params["w_hh"].shape[1]

    def step(carry, x_t):
        h, c = carry
        gates = (x_t @ params["w_ih"].T + h @ params["w_hh"].T
                 + params["b_ih"] + params["b_hh"])
        i_g = jax.nn.sigmoid(gates[:, 0 * H:1 * H])
        f_g = jax.nn.sigmoid(gates[:, 1 * H:2 * H])
        g_g = jnp.tanh(gates[:, 2 * H:3 * H])
        o_g = jax.nn.sigmoid(gates[:, 3 * H:4 * H])
        c_new = f_g * c + i_g * g_g
        h_new = o_g * jnp.tanh(c_new)
        return (h_new, c_new), h_new

    h0 = jnp.zeros((B, H), jnp.float32)
    c0 = jnp.zeros((B, H), jnp.float32)
    _, hs = lax.scan(step, (h0, c0), jnp.transpose(x, (1, 0, 2)))     # (T, B, H)
    lstm_out = jnp.transpose(hs, (1, 0, 2))                           # (B, T, H)
    return lstm_out @ params["fc_w"].T + params["fc_b"]


# ---------------------------------- main ----------------------------------- #
if __name__ == "__main__":
    embed_size, hidden_size, vocab_size = 32, 32, 40
    batch, cap_len = 2, 8          # LSTM sequence length T = 8 (1 feature + 7 tokens)

    key = jax.random.PRNGKey(0)
    k_param, k_feat, k_cap = jax.random.split(key, 3)

    params = init_decoder_params(k_param, embed_size, hidden_size, vocab_size)
    features = jax.random.normal(k_feat, (batch, embed_size), jnp.float32)
    captions = jax.random.randint(k_cap, (batch, cap_len), 0, vocab_size, jnp.int32)

    out = jax.jit(decoder_rnn_forward)(params, features, captions)
    out = jax.block_until_ready(out)

    ref = decoder_rnn_reference(params, features, captions)
    assert out.shape == (batch, cap_len, vocab_size), out.shape
    assert jnp.allclose(out, ref, atol=1e-4, rtol=1e-4), \
        float(jnp.max(jnp.abs(out - ref)))

    # TODO(synk): the autoregressive `sample()` method (host-side greedy loop with
    # .item()) is not implemented as a kernel; only the training forward pass is.
    print("KERNEL_OK")
</pallas_src>

<mosaic_0001>
module attributes {stable_mosaic.version = 11 : i64} {
  func.func @_decoder_kernel(%arg0: memref<64x32xf32, #tpu.memory_space<vmem>>, %arg1: memref<32x128xf32, #tpu.memory_space<vmem>>, %arg2: memref<32x128xf32, #tpu.memory_space<vmem>>, %arg3: memref<1x128xf32, #tpu.memory_space<vmem>>, %arg4: memref<32x128xf32, #tpu.memory_space<vmem>>, %arg5: memref<1x128xf32, #tpu.memory_space<vmem>>, %arg6: memref<64x128xf32, #tpu.memory_space<vmem>>, %arg7: memref<64x32xf32, #tpu.memory_space<vmem>>) attributes {dimension_semantics = [], scalar_prefetch = 0 : i64, scratch_operands = 1 : i64, tpu.core_type = #tpu.core_type<tc>} {
    %c0 = arith.constant 0 : index
    %c0_0 = arith.constant 0 : index
    %0 = vector.load %arg0[%c0, %c0_0] : memref<64x32xf32, #tpu.memory_space<vmem>>, vector<64x32xf32>
    %c0_1 = arith.constant 0 : index
    %c0_2 = arith.constant 0 : index
    %1 = vector.load %arg1[%c0_1, %c0_2] : memref<32x128xf32, #tpu.memory_space<vmem>>, vector<32x128xf32>
    %cst = arith.constant dense<0.000000e+00> : vector<64x128xf32>
    %2 = tpu.matmul %0, %1, %cst {dimension_numbers = #tpu.dot_dimension_numbers<[1], [0], [0], [1], [0, 0, 1, 1], [], []>} : vector<64x32xf32>, vector<32x128xf32>, vector<64x128xf32> -> vector<64x128xf32>
    %c0_3 = arith.constant 0 : index
    %c0_4 = arith.constant 0 : index
    %3 = vector.load %arg3[%c0_3, %c0_4] : memref<1x128xf32, #tpu.memory_space<vmem>>, vector<1x128xf32>
    %4 = vector.broadcast %3 : vector<1x128xf32> to vector<64x128xf32>
    %5 = arith.addf %2, %4 : vector<64x128xf32>
    %c0_5 = arith.constant 0 : index
    %c0_6 = arith.constant 0 : index
    %6 = vector.load %arg2[%c0_5, %c0_6] : memref<32x128xf32, #tpu.memory_space<vmem>>, vector<32x128xf32>
    %cst_7 = arith.constant 0.000000e+00 : f32
    %7 = vector.broadcast %cst_7 : f32 to vector<8x32xf32>
    %cst_8 = arith.constant 0.000000e+00 : f32
    %8 = vector.broadcast %cst_8 : f32 to vector<8x32xf32>
    %9 = vector.extract_strided_slice %5 {offsets = [0, 0], sizes = [8, 128], strides = [1, 1]} : vector<64x128xf32> to vector<8x128xf32>
    %cst_9 = arith.constant dense<0.000000e+00> : vector<8x128xf32>
    %10 = tpu.matmul %7, %6, %cst_9 {dimension_numbers = #tpu.dot_dimension_numbers<[1], [0], [0], [1], [0, 0, 1, 1], [], []>} : vector<8x32xf32>, vector<32x128xf32>, vector<8x128xf32> -> vector<8x128xf32>
    %11 = arith.addf %9, %10 : vector<8x128xf32>
    %12 = vector.extract_strided_slice %11 {offsets = [0, 0], sizes = [8, 32], strides = [1, 1]} : vector<8x128xf32> to vector<8x32xf32>
    %13 = arith.negf %12 : vector<8x32xf32>
    %14 = math.exp %13 : vector<8x32xf32>
    %cst_10 = arith.constant 1.000000e+00 : f32
    %15 = vector.broadcast %cst_10 : f32 to vector<8x32xf32>
    %16 = arith.addf %15, %14 : vector<8x32xf32>
    %17 = arith.divf %15, %16 : vector<8x32xf32>
    %18 = vector.extract_strided_slice %11 {offsets = [0, 32], sizes = [8, 32], strides = [1, 1]} : vector<8x128xf32> to vector<8x32xf32>
    %19 = arith.negf %18 : vector<8x32xf32>
    %20 = math.exp %19 : vector<8x32xf32>
    %cst_11 = arith.constant 1.000000e+00 : f32
    %21 = vector.broadcast %cst_11 : f32 to vector<8x32xf32>
    %22 = arith.addf %21, %20 : vector<8x32xf32>
    %23 = arith.divf %21, %22 : vector<8x32xf32>
    %24 = vector.extract_strided_slice %11 {offsets = [0, 64], sizes = [8, 32], strides = [1, 1]} : vector<8x128xf32> to vector<8x32xf32>
    %25 = math.tanh %24 : vector<8x32xf32>
    %26 = vector.extract_strided_slice %11 {offsets = [0, 96], sizes = [8, 32], strides = [1, 1]} : vector<8x128xf32> to vector<8x32xf32>
    %27 = arith.negf %26 : vector<8x32xf32>
    %28 = math.exp %27 : vector<8x32xf32>
    %cst_12 = arith.constant 1.000000e+00 : f32
    %29 = vector.broadcast %cst_12 : f32 to vector<8x32xf32>
    %30 = arith.addf %29, %28 : vector<8x32xf32>
    %31 = arith.divf %29, %30 : vector<8x32xf32>
    %32 = arith.mulf %23, %8 : vector<8x32xf32>
    %33 = arith.mulf %17, %25 : vector<8x32xf32>
    %34 = arith.addf %32, %33 : vector<8x32xf32>
    %35 = math.tanh %34 : vector<8x32xf32>
    %36 = arith.mulf %31, %35 : vector<8x32xf32>
    %c0_13 = arith.constant 0 : index
    %c0_14 = arith.constant 0 : index
    %37 = vector.load %arg7[%c0_13, %c0_14] : memref<64x32xf32, #tpu.memory_space<vmem>>, vector<8x32xf32>
    tpu.vector_store %arg7[%c0_13, %c0_14], %36 {strides = array<i32>} : memref<64x32xf32, #tpu.memory_space<vmem>>, vector<8x32xf32>,
    %38 = vector.extract_strided_slice %5 {offsets = [8, 0], sizes = [8, 128], strides = [1, 1]} : vector<64x128xf32> to vector<8x128xf32>
    %cst_15 = arith.constant dense<0.000000e+00> : vector<8x128xf32>
    %39 = tpu.matmul %36, %6, %cst_15 {dimension_numbers = #tpu.dot_dimension_numbers<[1], [0], [0], [1], [0, 0, 1, 1], [], []>} : vector<8x32xf32>, vector<32x128xf32>, vector<8x128xf32> -> vector<8x128xf32>
    %40 = arith.addf %38, %39 : vector<8x128xf32>
    %41 = vector.extract_strided_slice %40 {offsets = [0, 0], sizes = [8, 32], strides = [1, 1]} : vector<8x128xf32> to vector<8x32xf32>
    %42 = arith.negf %41 : vector<8x32xf32>
    %43 = math.exp %42 : vector<8x32xf32>
    %cst_16 = arith.constant 1.000000e+00 : f32
    %44 = vector.broadcast %cst_16 : f32 to vector<8x32xf32>
    %45 = arith.addf %44, %43 : vector<8x32xf32>
    %46 = arith.divf %44, %45 : vector<8x32xf32>
    %47 = vector.extract_strided_slice %40 {offsets = [0, 32], sizes = [8, 32], strides = [1, 1]} : vector<8x128xf32> to vector<8x32xf32>
    %48 = arith.negf %47 : vector<8x32xf32>
    %49 = math.exp %48 : vector<8x32xf32>
    %cst_17 = arith.constant 1.000000e+00 : f32
    %50 = vector.broadcast %cst_17 : f32 to vector<8x32xf32>
    %51 = arith.addf %50, %49 : vector<8x32xf32>
    %52 = arith.divf %50, %51 : vector<8x32xf32>
    %53 = vector.extract_strided_slice %40 {offsets = [0, 64], sizes = [8, 32], strides = [1, 1]} : vector<8x128xf32> to vector<8x32xf32>
    %54 = math.tanh %53 : vector<8x32xf32>
    %55 = vector.extract_strided_slice %40 {offsets = [0, 96], sizes = [8, 32], strides = [1, 1]} : vector<8x128xf32> to vector<8x32xf32>
    %56 = arith.negf %55 : vector<8x32xf32>
    %57 = math.exp %56 : vector<8x32xf32>
    %cst_18 = arith.constant 1.000000e+00 : f32
    %58 = vector.broadcast %cst_18 : f32 to vector<8x32xf32>
    %59 = arith.addf %58, %57 : vector<8x32xf32>
    %60 = arith.divf %58, %59 : vector<8x32xf32>
    %61 = arith.mulf %52, %34 : vector<8x32xf32>
    %62 = arith.mulf %46, %54 : vector<8x32xf32>
    %63 = arith.addf %61, %62 : vector<8x32xf32>
    %64 = math.tanh %63 : vector<8x32xf32>
    %65 = arith.mulf %60, %64 : vector<8x32xf32>
    %c8 = arith.constant 8 : index
    %c0_19 = arith.constant 0 : index
    %66 = vector.load %arg7[%c8, %c0_19] : memref<64x32xf32, #tpu.memory_space<vmem>>, vector<8x32xf32>
    tpu.vector_store %arg7[%c8, %c0_19], %65 {strides = array<i32>} : memref<64x32xf32, #tpu.memory_space<vmem>>, vector<8x32xf32>,
    %67 = vector.extract_strided_slice %5 {offsets = [16, 0], sizes = [8, 128], strides = [1, 1]} : vector<64x128xf32> to vector<8x128xf32>
    %cst_20 = arith.constant dense<0.000000e+00> : vector<8x128xf32>
    %68 = tpu.matmul %65, %6, %cst_20 {dimension_numbers = #tpu.dot_dimension_numbers<[1], [0], [0], [1], [0, 0, 1, 1], [], []>} : vector<8x32xf32>, vector<32x128xf32>, vector<8x128xf32> -> vector<8x128xf32>
    %69 = arith.addf %67, %68 : vector<8x128xf32>
    %70 = vector.extract_strided_slice %69 {offsets = [0, 0], sizes = [8, 32], strides = [1, 1]} : vector<8x128xf32> to vector<8x32xf32>
    %71 = arith.negf %70 : vector<8x32xf32>
    %72 = math.exp %71 : vector<8x32xf32>
    %cst_21 = arith.constant 1.000000e+00 : f32
    %73 = vector.broadcast %cst_21 : f32 to vector<8x32xf32>
    %74 = arith.addf %73, %72 : vector<8x32xf32>
    %75 = arith.divf %73, %74 : vector<8x32xf32>
    %76 = vector.extract_strided_slice %69 {offsets = [0, 32], sizes = [8, 32], strides = [1, 1]} : vector<8x128xf32> to vector<8x32xf32>
    %77 = arith.negf %76 : vector<8x32xf32>
    %78 = math.exp %77 : vector<8x32xf32>
    %cst_22 = arith.constant 1.000000e+00 : f32
    %79 = vector.broadcast %cst_22 : f32 to vector<8x32xf32>
    %80 = arith.addf %79, %78 : vector<8x32xf32>
    %81 = arith.divf %79, %80 : vector<8x32xf32>
    %82 = vector.extract_strided_slice %69 {offsets = [0, 64], sizes = [8, 32], strides = [1, 1]} : vector<8x128xf32> to vector<8x32xf32>
    %83 = math.tanh %82 : vector<8x32xf32>
    %84 = vector.extract_strided_slice %69 {offsets = [0, 96], sizes = [8, 32], strides = [1, 1]} : vector<8x128xf32> to vector<8x32xf32>
    %85 = arith.negf %84 : vector<8x32xf32>
    %86 = math.exp %85 : vector<8x32xf32>
    %cst_23 = arith.constant 1.000000e+00 : f32
    %87 = vector.broadcast %cst_23 : f32 to vector<8x32xf32>
    %88 = arith.addf %87, %86 : vector<8x32xf32>
    %89 = arith.divf %87, %88 : vector<8x32xf32>
    %90 = arith.mulf %81, %63 : vector<8x32xf32>
    %91 = arith.mulf %75, %83 : vector<8x32xf32>
    %92 = arith.addf %90, %91 : vector<8x32xf32>
    %93 = math.tanh %92 : vector<8x32xf32>
    %94 = arith.mulf %89, %93 : vector<8x32xf32>
    %c16 = arith.constant 16 : index
    %c0_24 = arith.constant 0 : index
    %95 = vector.load %arg7[%c16, %c0_24] : memref<64x32xf32, #tpu.memory_space<vmem>>, vector<8x32xf32>
    tpu.vector_store %arg7[%c16, %c0_24], %94 {strides = array<i32>} : memref<64x32xf32, #tpu.memory_space<vmem>>, vector<8x32xf32>,
    %96 = vector.extract_strided_slice %5 {offsets = [24, 0], sizes = [8, 128], strides = [1, 1]} : vector<64x128xf32> to vector<8x128xf32>
    %cst_25 = arith.constant dense<0.000000e+00> : vector<8x128xf32>
    %97 = tpu.matmul %94, %6, %cst_25 {dimension_numbers = #tpu.dot_dimension_numbers<[1], [0], [0], [1], [0, 0, 1, 1], [], []>} : vector<8x32xf32>, vector<32x128xf32>, vector<8x128xf32> -> vector<8x128xf32>
    %98 = arith.addf %96, %97 : vector<8x128xf32>
    %99 = vector.extract_strided_slice %98 {offsets = [0, 0], sizes = [8, 32], strides = [1, 1]} : vector<8x128xf32> to vector<8x32xf32>
    %100 = arith.negf %99 : vector<8x32xf32>
    %101 = math.exp %100 : vector<8x32xf32>
    %cst_26 = arith.constant 1.000000e+00 : f32
    %102 = vector.broadcast %cst_26 : f32 to vector<8x32xf32>
    %103 = arith.addf %102, %101 : vector<8x32xf32>
    %104 = arith.divf %102, %103 : vector<8x32xf32>
    %105 = vector.extract_strided_slice %98 {offsets = [0, 32], sizes = [8, 32], strides = [1, 1]} : vector<8x128xf32> to vector<8x32xf32>
    %106 = arith.negf %105 : vector<8x32xf32>
    %107 = math.exp %106 : vector<8x32xf32>
    %cst_27 = arith.constant 1.000000e+00 : f32
    %108 = vector.broadcast %cst_27 : f32 to vector<8x32xf32>
    %109 = arith.addf %108, %107 : vector<8x32xf32>
    %110 = arith.divf %108, %109 : vector<8x32xf32>
    %111 = vector.extract_strided_slice %98 {offsets = [0, 64], sizes = [8, 32], strides = [1, 1]} : vector<8x128xf32> to vector<8x32xf32>
    %112 = math.tanh %111 : vector<8x32xf32>
    %113 = vector.extract_strided_slice %98 {offsets = [0, 96], sizes = [8, 32], strides = [1, 1]} : vector<8x128xf32> to vector<8x32xf32>
    %114 = arith.negf %113 : vector<8x32xf32>
    %115 = math.exp %114 : vector<8x32xf32>
    %cst_28 = arith.constant 1.000000e+00 : f32
    %116 = vector.broadcast %cst_28 : f32 to vector<8x32xf32>
    %117 = arith.addf %116, %115 : vector<8x32xf32>
    %118 = arith.divf %116, %117 : vector<8x32xf32>
    %119 = arith.mulf %110, %92 : vector<8x32xf32>
    %120 = arith.mulf %104, %112 : vector<8x32xf32>
    %121 = arith.addf %119, %120 : vector<8x32xf32>
    %122 = math.tanh %121 : vector<8x32xf32>
    %123 = arith.mulf %118, %122 : vector<8x32xf32>
    %c24 = arith.constant 24 : index
    %c0_29 = arith.constant 0 : index
    %124 = vector.load %arg7[%c24, %c0_29] : memref<64x32xf32, #tpu.memory_space<vmem>>, vector<8x32xf32>
    tpu.vector_store %arg7[%c24, %c0_29], %123 {strides = array<i32>} : memref<64x32xf32, #tpu.memory_space<vmem>>, vector<8x32xf32>,
    %125 = vector.extract_strided_slice %5 {offsets = [32, 0], sizes = [8, 128], strides = [1, 1]} : vector<64x128xf32> to vector<8x128xf32>
    %cst_30 = arith.constant dense<0.000000e+00> : vector<8x128xf32>
    %126 = tpu.matmul %123, %6, %cst_30 {dimension_numbers = #tpu.dot_dimension_numbers<[1], [0], [0], [1], [0, 0, 1, 1], [], []>} : vector<8x32xf32>, vector<32x128xf32>, vector<8x128xf32> -> vector<8x128xf32>
    %127 = arith.addf %125, %126 : vector<8x128xf32>
    %128 = vector.extract_strided_slice %127 {offsets = [0, 0], sizes = [8, 32], strides = [1, 1]} : vector<8x128xf32> to vector<8x32xf32>
    %129 = arith.negf %128 : vector<8x32xf32>
    %130 = math.exp %129 : vector<8x32xf32>
    %cst_31 = arith.constant 1.000000e+00 : f32
    %131 = vector.broadcast %cst_31 : f32 to vector<8x32xf32>
    %132 = arith.addf %131, %130 : vector<8x32xf32>
    %133 = arith.divf %131, %132 : vector<8x32xf32>
    %134 = vector.extract_strided_slice %127 {offsets = [0, 32], sizes = [8, 32], strides = [1, 1]} : vector<8x128xf32> to vector<8x32xf32>
    %135 = arith.negf %134 : vector<8x32xf32>
    %136 = math.exp %135 : vector<8x32xf32>
    %cst_32 = arith.constant 1.000000e+00 : f32
    %137 = vector.broadcast %cst_32 : f32 to vector<8x32xf32>
    %138 = arith.addf %137, %136 : vector<8x32xf32>
    %139 = arith.divf %137, %138 : vector<8x32xf32>
    %140 = vector.extract_strided_slice %127 {offsets = [0, 64], sizes = [8, 32], strides = [1, 1]} : vector<8x128xf32> to vector<8x32xf32>
    %141 = math.tanh %140 : vector<8x32xf32>
    %142 = vector.extract_strided_slice %127 {offsets = [0, 96], sizes = [8, 32], strides = [1, 1]} : vector<8x128xf32> to vector<8x32xf32>
    %143 = arith.negf %142 : vector<8x32xf32>
    %144 = math.exp %143 : vector<8x32xf32>
    %cst_33 = arith.constant 1.000000e+00 : f32
    %145 = vector.broadcast %cst_33 : f32 to vector<8x32xf32>
    %146 = arith.addf %145, %144 : vector<8x32xf32>
    %147 = arith.divf %145, %146 : vector<8x32xf32>
    %148 = arith.mulf %139, %121 : vector<8x32xf32>
    %149 = arith.mulf %133, %141 : vector<8x32xf32>
    %150 = arith.addf %148, %149 : vector<8x32xf32>
    %151 = math.tanh %150 : vector<8x32xf32>
    %152 = arith.mulf %147, %151 : vector<8x32xf32>
    %c32 = arith.constant 32 : index
    %c0_34 = arith.constant 0 : index
    %153 = vector.load %arg7[%c32, %c0_34] : memref<64x32xf32, #tpu.memory_space<vmem>>, vector<8x32xf32>
    tpu.vector_store %arg7[%c32, %c0_34], %152 {strides = array<i32>} : memref<64x32xf32, #tpu.memory_space<vmem>>, vector<8x32xf32>,
    %154 = vector.extract_strided_slice %5 {offsets = [40, 0], sizes = [8, 128], strides = [1, 1]} : vector<64x128xf32> to vector<8x128xf32>
    %cst_35 = arith.constant dense<0.000000e+00> : vector<8x128xf32>
    %155 = tpu.matmul %152, %6, %cst_35 {dimension_numbers = #tpu.dot_dimension_numbers<[1], [0], [0], [1], [0, 0, 1, 1], [], []>} : vector<8x32xf32>, vector<32x128xf32>, vector<8x128xf32> -> vector<8x128xf32>
    %156 = arith.addf %154, %155 : vector<8x128xf32>
    %157 = vector.extract_strided_slice %156 {offsets = [0, 0], sizes = [8, 32], strides = [1, 1]} : vector<8x128xf32> to vector<8x32xf32>
    %158 = arith.negf %157 : vector<8x32xf32>
    %159 = math.exp %158 : vector<8x32xf32>
    %cst_36 = arith.constant 1.000000e+00 : f32
    %160 = vector.broadcast %cst_36 : f32 to vector<8x32xf32>
    %161 = arith.addf %160, %159 : vector<8x32xf32>
    %162 = arith.divf %160, %161 : vector<8x32xf32>
    %163 = vector.extract_strided_slice %156 {offsets = [0, 32], sizes = [8, 32], strides = [1, 1]} : vector<8x128xf32> to vector<8x32xf32>
    %164 = arith.negf %163 : vector<8x32xf32>
    %165 = math.exp %164 : vector<8x32xf32>
    %cst_37 = arith.constant 1.000000e+00 : f32
    %166 = vector.broadcast %cst_37 : f32 to vector<8x32xf32>
    %167 = arith.addf %166, %165 : vector<8x32xf32>
    %168 = arith.divf %166, %167 : vector<8x32xf32>
    %169 = vector.extract_strided_slice %156 {offsets = [0, 64], sizes = [8, 32], strides = [1, 1]} : vector<8x128xf32> to vector<8x32xf32>
    %170 = math.tanh %169 : vector<8x32xf32>
    %171 = vector.extract_strided_slice %156 {offsets = [0, 96], sizes = [8, 32], strides = [1, 1]} : vector<8x128xf32> to vector<8x32xf32>
    %172 = arith.negf %171 : vector<8x32xf32>
    %173 = math.exp %172 : vector<8x32xf32>
    %cst_38 = arith.constant 1.000000e+00 : f32
    %174 = vector.broadcast %cst_38 : f32 to vector<8x32xf32>
    %175 = arith.addf %174, %173 : vector<8x32xf32>
    %176 = arith.divf %174, %175 : vector<8x32xf32>
    %177 = arith.mulf %168, %150 : vector<8x32xf32>
    %178 = arith.mulf %162, %170 : vector<8x32xf32>
    %179 = arith.addf %177, %178 : vector<8x32xf32>
    %180 = math.tanh %179 : vector<8x32xf32>
    %181 = arith.mulf %176, %180 : vector<8x32xf32>
    %c40 = arith.constant 40 : index
    %c0_39 = arith.constant 0 : index
    %182 = vector.load %arg7[%c40, %c0_39] : memref<64x32xf32, #tpu.memory_space<vmem>>, vector<8x32xf32>
    tpu.vector_store %arg7[%c40, %c0_39], %181 {strides = array<i32>} : memref<64x32xf32, #tpu.memory_space<vmem>>, vector<8x32xf32>,
    %183 = vector.extract_strided_slice %5 {offsets = [48, 0], sizes = [8, 128], strides = [1, 1]} : vector<64x128xf32> to vector<8x128xf32>
    %cst_40 = arith.constant dense<0.000000e+00> : vector<8x128xf32>
    %184 = tpu.matmul %181, %6, %cst_40 {dimension_numbers = #tpu.dot_dimension_numbers<[1], [0], [0], [1], [0, 0, 1, 1], [], []>} : vector<8x32xf32>, vector<32x128xf32>, vector<8x128xf32> -> vector<8x128xf32>
    %185 = arith.addf %183, %184 : vector<8x128xf32>
    %186 = vector.extract_strided_slice %185 {offsets = [0, 0], sizes = [8, 32], strides = [1, 1]} : vector<8x128xf32> to vector<8x32xf32>
    %187 = arith.negf %186 : vector<8x32xf32>
    %188 = math.exp %187 : vector<8x32xf32>
    %cst_41 = arith.constant 1.000000e+00 : f32
    %189 = vector.broadcast %cst_41 : f32 to vector<8x32xf32>
    %190 = arith.addf %189, %188 : vector<8x32xf32>
    %191 = arith.divf %189, %190 : vector<8x32xf32>
    %192 = vector.extract_strided_slice %185 {offsets = [0, 32], sizes = [8, 32], strides = [1, 1]} : vector<8x128xf32> to vector<8x32xf32>
    %193 = arith.negf %192 : vector<8x32xf32>
    %194 = math.exp %193 : vector<8x32xf32>
    %cst_42 = arith.constant 1.000000e+00 : f32
    %195 = vector.broadcast %cst_42 : f32 to vector<8x32xf32>
    %196 = arith.addf %195, %194 : vector<8x32xf32>
    %197 = arith.divf %195, %196 : vector<8x32xf32>
    %198 = vector.extract_strided_slice %185 {offsets = [0, 64], sizes = [8, 32], strides = [1, 1]} : vector<8x128xf32> to vector<8x32xf32>
    %199 = math.tanh %198 : vector<8x32xf32>
    %200 = vector.extract_strided_slice %185 {offsets = [0, 96], sizes = [8, 32], strides = [1, 1]} : vector<8x128xf32> to vector<8x32xf32>
    %201 = arith.negf %200 : vector<8x32xf32>
    %202 = math.exp %201 : vector<8x32xf32>
    %cst_43 = arith.constant 1.000000e+00 : f32
    %203 = vector.broadcast %cst_43 : f32 to vector<8x32xf32>
    %204 = arith.addf %203, %202 : vector<8x32xf32>
    %205 = arith.divf %203, %204 : vector<8x32xf32>
    %206 = arith.mulf %197, %179 : vector<8x32xf32>
    %207 = arith.mulf %191, %199 : vector<8x32xf32>
    %208 = arith.addf %206, %207 : vector<8x32xf32>
    %209 = math.tanh %208 : vector<8x32xf32>
    %210 = arith.mulf %205, %209 : vector<8x32xf32>
    %c48 = arith.constant 48 : index
    %c0_44 = arith.constant 0 : index
    %211 = vector.load %arg7[%c48, %c0_44] : memref<64x32xf32, #tpu.memory_space<vmem>>, vector<8x32xf32>
    tpu.vector_store %arg7[%c48, %c0_44], %210 {strides = array<i32>} : memref<64x32xf32, #tpu.memory_space<vmem>>, vector<8x32xf32>,
    %212 = vector.extract_strided_slice %5 {offsets = [56, 0], sizes = [8, 128], strides = [1, 1]} : vector<64x128xf32> to vector<8x128xf32>
    %cst_45 = arith.constant dense<0.000000e+00> : vector<8x128xf32>
    %213 = tpu.matmul %210, %6, %cst_45 {dimension_numbers = #tpu.dot_dimension_numbers<[1], [0], [0], [1], [0, 0, 1, 1], [], []>} : vector<8x32xf32>, vector<32x128xf32>, vector<8x128xf32> -> vector<8x128xf32>
    %214 = arith.addf %212, %213 : vector<8x128xf32>
    %215 = vector.extract_strided_slice %214 {offsets = [0, 0], sizes = [8, 32], strides = [1, 1]} : vector<8x128xf32> to vector<8x32xf32>
    %216 = arith.negf %215 : vector<8x32xf32>
    %217 = math.exp %216 : vector<8x32xf32>
    %cst_46 = arith.constant 1.000000e+00 : f32
    %218 = vector.broadcast %cst_46 : f32 to vector<8x32xf32>
    %219 = arith.addf %218, %217 : vector<8x32xf32>
    %220 = arith.divf %218, %219 : vector<8x32xf32>
    %221 = vector.extract_strided_slice %214 {offsets = [0, 32], sizes = [8, 32], strides = [1, 1]} : vector<8x128xf32> to vector<8x32xf32>
    %222 = arith.negf %221 : vector<8x32xf32>
    %223 = math.exp %222 : vector<8x32xf32>
    %cst_47 = arith.constant 1.000000e+00 : f32
    %224 = vector.broadcast %cst_47 : f32 to vector<8x32xf32>
    %225 = arith.addf %224, %223 : vector<8x32xf32>
    %226 = arith.divf %224, %225 : vector<8x32xf32>
    %227 = vector.extract_strided_slice %214 {offsets = [0, 64], sizes = [8, 32], strides = [1, 1]} : vector<8x128xf32> to vector<8x32xf32>
    %228 = math.tanh %227 : vector<8x32xf32>
    %229 = vector.extract_strided_slice %214 {offsets = [0, 96], sizes = [8, 32], strides = [1, 1]} : vector<8x128xf32> to vector<8x32xf32>
    %230 = arith.negf %229 : vector<8x32xf32>
    %231 = math.exp %230 : vector<8x32xf32>
    %cst_48 = arith.constant 1.000000e+00 : f32
    %232 = vector.broadcast %cst_48 : f32 to vector<8x32xf32>
    %233 = arith.addf %232, %231 : vector<8x32xf32>
    %234 = arith.divf %232, %233 : vector<8x32xf32>
    %235 = arith.mulf %226, %208 : vector<8x32xf32>
    %236 = arith.mulf %220, %228 : vector<8x32xf32>
    %237 = arith.addf %235, %236 : vector<8x32xf32>
    %238 = math.tanh %237 : vector<8x32xf32>
    %239 = arith.mulf %234, %238 : vector<8x32xf32>
    %c56 = arith.constant 56 : index
    %c0_49 = arith.constant 0 : index
    %240 = vector.load %arg7[%c56, %c0_49] : memref<64x32xf32, #tpu.memory_space<vmem>>, vector<8x32xf32>
    tpu.vector_store %arg7[%c56, %c0_49], %239 {strides = array<i32>} : memref<64x32xf32, #tpu.memory_space<vmem>>, vector<8x32xf32>,
    %c0_50 = arith.constant 0 : index
    %c0_51 = arith.constant 0 : index
    %241 = vector.load %arg7[%c0_50, %c0_51] : memref<64x32xf32, #tpu.memory_space<vmem>>, vector<64x32xf32>
    %c0_52 = arith.constant 0 : index
    %c0_53 = arith.constant 0 : index
    %242 = vector.load %arg4[%c0_52, %c0_53] : memref<32x128xf32, #tpu.memory_space<vmem>>, vector<32x128xf32>
    %cst_54 = arith.constant dense<0.000000e+00> : vector<64x128xf32>
    %243 = tpu.matmul %241, %242, %cst_54 {dimension_numbers = #tpu.dot_dimension_numbers<[1], [0], [0], [1], [0, 0, 1, 1], [], []>} : vector<64x32xf32>, vector<32x128xf32>, vector<64x128xf32> -> vector<64x128xf32>
    %c0_55 = arith.constant 0 : index
    %c0_56 = arith.constant 0 : index
    %244 = vector.load %arg5[%c0_55, %c0_56] : memref<1x128xf32, #tpu.memory_space<vmem>>, vector<1x128xf32>
    %245 = vector.broadcast %244 : vector<1x128xf32> to vector<64x128xf32>
    %246 = arith.addf %243, %245 : vector<64x128xf32>
    %c0_57 = arith.constant 0 : index
    %c0_58 = arith.constant 0 : index
    %247 = vector.load %arg6[%c0_57, %c0_58] : memref<64x128xf32, #tpu.memory_space<vmem>>, vector<64x128xf32>
    tpu.vector_store %arg6[%c0_57, %c0_58], %246 {strides = array<i32>} : memref<64x128xf32, #tpu.memory_space<vmem>>, vector<64x128xf32>,
    return
  }
}

</mosaic_0001>

<llo_original>
// kernel: decoder_rnn_forward.1
$region0: #{decoder_rnn_forward.1}
  #allocation0 [shape = 'u32[]', space=smem, size = 0x4, offset = 0x4, fixed_abs, tag = 'smem constant byte address 0x4 - core index']
  #allocation1 [shape = 'u32[144,128]{1,0:T(1,128)}', space=vmem, size = 0x12000, scoped, tag = 'internal scratch']
  #allocation2 [shape = 'f32[64,32]{1,0:T(8,128)}', space=vmem, size = 0x8000, scoped, tag = 'scratch operand']
  %s0 = inlined_call_operand.vmem [shape: f32[64,32], index: 0, kind: input, shape index: {}]
  %s1 = inlined_call_operand.vmem [shape: f32[32,128], index: 1, kind: input, shape index: {}]
  %s2 = inlined_call_operand.vmem [shape: f32[32,128], index: 2, kind: input, shape index: {}]
  %s3 = inlined_call_operand.vmem [shape: f32[1,128], index: 3, kind: input, shape index: {}]
  %s4 = inlined_call_operand.vmem [shape: f32[32,128], index: 4, kind: input, shape index: {}]
  %s5 = inlined_call_operand.vmem [shape: f32[1,128], index: 5, kind: input, shape index: {}]
  %s6 = inlined_call_operand.vmem [shape: f32[64,128], index: 6, kind: output, shape index: {}]
  %s7 = sld [smem:[#allocation0]]
  $region34: #{decoder_rnn_forward.1} parent=0
    _
  %s9 = ssub.s32 1, %s7
  %s10 = scalar_select 0, %s9, %s7
  // Predicated region
  $region2: #{decoder_rnn_forward.1} parent=0 // pred_check
    _
  $region3: #{decoder_rnn_forward.1} parent=0 // pred_check_branch
    %12 = sbr.rel (0) target = $region5
  $region4: #{decoder_rnn_forward.1} parent=0 // pred_region
    _
  $region5: #{decoder_rnn_forward.1} parent=0 // pred_fallthru
    _
  // Predicated region
  $region6: #{decoder_rnn_forward.1} parent=0 // pred_check
    _
  $region7: #{decoder_rnn_forward.1} parent=0 // pred_check_branch
    %14 = sbr.rel (0) target = $region9
  $region8: #{decoder_rnn_forward.1} parent=0 // pred_region
    _
  $region9: #{decoder_rnn_forward.1} parent=0 // pred_fallthru
    _
  // Predicated region
  $region10: #{decoder_rnn_forward.1} parent=0 // pred_check
    _
  $region11: #{decoder_rnn_forward.1} parent=0 // pred_check_branch
    %16 = sbr.rel (0) target = $region13
  $region12: #{decoder_rnn_forward.1} parent=0 // pred_region
    _
  $region13: #{decoder_rnn_forward.1} parent=0 // pred_fallthru
    _
  // Predicated region
  $region14: #{decoder_rnn_forward.1} parent=0 // pred_check
    _
  $region15: #{decoder_rnn_forward.1} parent=0 // pred_check_branch
    %18 = sbr.rel (0) target = $region17
  $region16: #{decoder_rnn_forward.1} parent=0 // pred_region
    _
  $region17: #{decoder_rnn_forward.1} parent=0 // pred_fallthru
    _
  // Predicated region
  $region18: #{decoder_rnn_forward.1} parent=0 // pred_check
    _
  $region19: #{decoder_rnn_forward.1} parent=0 // pred_check_branch
    %20 = sbr.rel (0) target = $region21
  $region20: #{decoder_rnn_forward.1} parent=0 // pred_region
    _
  $region21: #{decoder_rnn_forward.1} parent=0 // pred_fallthru
    _
  // Predicated region
  $region22: #{decoder_rnn_forward.1} parent=0 // pred_check
    _
  $region23: #{decoder_rnn_forward.1} parent=0 // pred_check_branch
    %22 = sbr.rel (0) target = $region25
  $region24: #{decoder_rnn_forward.1} parent=0 // pred_region
    _
  $region25: #{decoder_rnn_forward.1} parent=0 // pred_fallthru
    _
  %v23 = vld [vmem:[%s0] sm:$0xff]
  %v24 = vld [vmem:[%s0 + $0x8] sm:$0xff]
  %v25 = vld [vmem:[%s0 + $0x10] sm:$0xff]
  %v26 = vld [vmem:[%s0 + $0x18] sm:$0xff]
  %v27 = vld [vmem:[%s0 + $0x20] sm:$0xff]
  %v28 = vld [vmem:[%s0 + $0x28] sm:$0xff]
  %v29 = vld [vmem:[%s0 + $0x30] sm:$0xff]
  %v30 = vld [vmem:[%s0 + $0x38] sm:$0xff]
  %v31 = vld [vmem:[%s1] sm:$0xff]
  %v32 = vld [vmem:[%s1 + $0x8] sm:$0xff]
  %v33 = vld [vmem:[%s1 + $0x10] sm:$0xff]
  %v34 = vld [vmem:[%s1 + $0x18] sm:$0xff]
  %v35 = vld [vmem:[%s3] sm:$0x1]
  %v37 = vlaneseq
  %v38 = vshrl.u32 %v37, 7
  %v39 = vsub.s32 0, %v38
  %v40 = vrot.slane %v35, %v39
  %vm42 = vcmask 261120
  %v44 = vsel %vm42, %v23, 0
  %v47 = vsel %vm42, %v24, 0
  %v50 = vsel %vm42, %v25, 0
  %v53 = vsel %vm42, %v26, 0
  %v56 = vsel %vm42, %v27, 0
  %v59 = vsel %vm42, %v28, 0
  %v62 = vsel %vm42, %v29, 0
  %v65 = vsel %vm42, %v30, 0
  %67 = vmatprep.subr.mxu0 0.0
  %68 = vmatpush1.msra.mxu0 %v31
  %69 = vmatprep.subr.mxu0 0.0
  %70 = vmatpush1.msra.mxu0 %v32
  %71 = vmatprep.subr.mxu0 0.0
  %72 = vmatpush1.msra.mxu0 %v33
  %73 = vmatprep.subr.mxu0 0.0
  %74 = vmatpush1.msra.mxu0 %v34
  %75 = vmatprep.subr.mxu0 0.0
  %76 = vmatpush1.msra.mxu0 0.0
  %77 = vmatprep.subr.mxu0 0.0
  %78 = vmatpush1.msra.mxu0 0.0
  %79 = vmatprep.subr.mxu0 0.0
  %80 = vmatpush1.msra.mxu0 0.0
  %81 = vmatprep.subr.mxu0 0.0
  %82 = vmatpush1.msra.mxu0 0.0
  %83 = vmatprep.subr.mxu0 0.0
  %84 = vmatpush1.msra.mxu0 0.0
  %85 = vmatprep.subr.mxu0 0.0
  %86 = vmatpush1.msra.mxu0 0.0
  %87 = vmatprep.subr.mxu0 0.0
  %88 = vmatpush1.msra.mxu0 0.0
  %89 = vmatprep.subr.mxu0 0.0
  %90 = vmatpush1.msra.mxu0 0.0
  %91 = vmatprep.subr.mxu0 0.0
  %92 = vmatpush1.msra.mxu0 0.0
  %93 = vmatprep.subr.mxu0 0.0
  %94 = vmatpush1.msra.mxu0 0.0
  %95 = vmatprep.subr.mxu0 0.0
  %96 = vmatpush1.msra.mxu0 0.0
  %97 = vmatprep.subr.mxu0 0.0
  %98 = vmatpush1.msra.mxu0 0.0
  %99 = vmatprep.subr.mxu0 0.0
  %100 = vmatpush1.msra.mxu0 0.0
  %101 = vmatprep.subr.mxu0 0.0
  %102 = vmatpush1.msra.mxu0 0.0
  %103 = vmatprep.subr.mxu0 0.0
  %104 = vmatpush1.msra.mxu0 0.0
  %105 = vmatprep.subr.mxu0 0.0
  %106 = vmatpush1.msra.mxu0 0.0
  %107 = vmatprep.subr.mxu0 0.0
  %108 = vmatpush1.msra.mxu0 0.0
  %109 = vmatprep.subr.mxu0 0.0
  %110 = vmatpush1.msra.mxu0 0.0
  %111 = vmatprep.subr.mxu0 0.0
  %112 = vmatpush1.msra.mxu0 0.0
  %113 = vmatprep.subr.mxu0 0.0
  %114 = vmatpush1.msra.mxu0 0.0
  %115 = vmatprep.subr.mxu0 0.0
  %116 = vmatpush1.msra.mxu0 0.0
  %117 = vmatprep.subr.mxu0 0.0
  %118 = vmatpush1.msra.mxu0 0.0
  %119 = vmatprep.subr.mxu0 0.0
  %120 = vmatpush1.msra.mxu0 0.0
  %121 = vmatprep.subr.mxu0 0.0
  %122 = vmatpush1.msra.mxu0 0.0
  %123 = vmatprep.subr.mxu0 0.0
  %124 = vmatpush1.msra.mxu0 0.0
  %125 = vmatprep.subr.mxu0 0.0
  %126 = vmatpush1.msra.mxu0 0.0
  %127 = vmatprep.subr.mxu0 0.0
  %128 = vmatpush1.msra.mxu0 0.0
  %129 = vmatprep.subr.mxu0 0.0
  %130 = vmatpush1.msra.mxu0 0.0
  %131 = vmatprep.mubr.f32.mxu0 0.0
  %132 = vmatmul.mubr.f32.gmra.mrb[0].mxu0 %v44
  %v133 = vpop.f32.mrb[0].mxu0
  %v134 = vadd.f32 %v40, %v133
  %v135 = vpop.f32.mrb[0].mxu0
  %136 = vmatprep.mubr.f32.mxu0 0.0
  %137 = vmatmul.mubr.f32.gmra.mrb[0].mxu0 %v47
  %v138 = vpop.f32.mrb[0].mxu0
  %v139 = vadd.f32 %v40, %v138
  %v140 = vpop.f32.mrb[0].mxu0
  %141 = vmatprep.mubr.f32.mxu0 0.0
  %142 = vmatmul.mubr.f32.gmra.mrb[0].mxu0 %v50
  %v143 = vpop.f32.mrb[0].mxu0
  %v144 = vadd.f32 %v40, %v143
  %v145 = vpop.f32.mrb[0].mxu0
  %146 = vmatprep.mubr.f32.mxu0 0.0
  %147 = vmatmul.mubr.f32.gmra.mrb[0].mxu0 %v53
  %v148 = vpop.f32.mrb[0].mxu0
  %v149 = vadd.f32 %v40, %v148
  %v150 = vpop.f32.mrb[0].mxu0
  %151 = vmatprep.mubr.f32.mxu0 0.0
  %152 = vmatmul.mubr.f32.gmra.mrb[0].mxu0 %v56
  %v153 = vpop.f32.mrb[0].mxu0
  %v154 = vadd.f32 %v40, %v153
  %v155 = vpop.f32.mrb[0].mxu0
  %156 = vmatprep.mubr.f32.mxu0 0.0
  %157 = vmatmul.mubr.f32.gmra.mrb[0].mxu0 %v59
  %v158 = vpop.f32.mrb[0].mxu0
  %v159 = vadd.f32 %v40, %v158
  %v160 = vpop.f32.mrb[0].mxu0
  %161 = vmatprep.mubr.f32.mxu0 0.0
  %162 = vmatmul.mubr.f32.gmra.mrb[0].mxu0 %v62
  %v163 = vpop.f32.mrb[0].mxu0
  %v164 = vadd.f32 %v40, %v163
  %v165 = vpop.f32.mrb[0].mxu0
  %166 = vmatprep.mubr.f32.mxu0 0.0
  %167 = vmatmul.mubr.f32.gmra.mrb[0].mxu0 %v65
  %v168 = vpop.f32.mrb[0].mxu0
  %v169 = vadd.f32 %v40, %v168
  %v170 = vpop.f32.mrb[0].mxu0
  %171 = vdwg.mxu0
  %v172 = vld [vmem:[%s2] sm:$0xff]
  %v173 = vld [vmem:[%s2 + $0x8] sm:$0xff]
  %v174 = vld [vmem:[%s2 + $0x10] sm:$0xff]
  %v175 = vld [vmem:[%s2 + $0x18] sm:$0xff]
  %v177 = vsel %vm42, 0.0, 0
  %179 = vmatprep.subr.mxu0 0.0
  %180 = vmatpush1.msra.mxu0 %v172
  %181 = vmatprep.subr.mxu0 0.0
  %182 = vmatpush1.msra.mxu0 %v173
  %183 = vmatprep.subr.mxu0 0.0
  %184 = vmatpush1.msra.mxu0 %v174
  %185 = vmatprep.subr.mxu0 0.0
  %186 = vmatpush1.msra.mxu0 %v175
  %187 = vmatprep.subr.mxu0 0.0
  %188 = vmatpush1.msra.mxu0 0.0
  %189 = vmatprep.subr.mxu0 0.0
  %190 = vmatpush1.msra.mxu0 0.0
  %191 = vmatprep.subr.mxu0 0.0
  %192 = vmatpush1.msra.mxu0 0.0
  %193 = vmatprep.subr.mxu0 0.0
  %194 = vmatpush1.msra.mxu0 0.0
  %195 = vmatprep.subr.mxu0 0.0
  %196 = vmatpush1.msra.mxu0 0.0
  %197 = vmatprep.subr.mxu0 0.0
  %198 = vmatpush1.msra.mxu0 0.0
  %199 = vmatprep.subr.mxu0 0.0
  %200 = vmatpush1.msra.mxu0 0.0
  %201 = vmatprep.subr.mxu0 0.0
  %202 = vmatpush1.msra.mxu0 0.0
  %203 = vmatprep.subr.mxu0 0.0
  %204 = vmatpush1.msra.mxu0 0.0
  %205 = vmatprep.subr.mxu0 0.0
  %206 = vmatpush1.msra.mxu0 0.0
  %207 = vmatprep.subr.mxu0 0.0
  %208 = vmatpush1.msra.mxu0 0.0
  %209 = vmatprep.subr.mxu0 0.0
  %210 = vmatpush1.msra.mxu0 0.0
  %211 = vmatprep.subr.mxu0 0.0
  %212 = vmatpush1.msra.mxu0 0.0
  %213 = vmatprep.subr.mxu0 0.0
  %214 = vmatpush1.msra.mxu0 0.0
  %215 = vmatprep.subr.mxu0 0.0
  %216 = vmatpush1.msra.mxu0 0.0
  %217 = vmatprep.subr.mxu0 0.0
  %218 = vmatpush1.msra.mxu0 0.0
  %219 = vmatprep.subr.mxu0 0.0
  %220 = vmatpush1.msra.mxu0 0.0
  %221 = vmatprep.subr.mxu0 0.0
  %222 = vmatpush1.msra.mxu0 0.0
  %223 = vmatprep.subr.mxu0 0.0
  %224 = vmatpush1.msra.mxu0 0.0
  %225 = vmatprep.subr.mxu0 0.0
  %226 = vmatpush1.msra.mxu0 0.0
  %227 = vmatprep.subr.mxu0 0.0
  %228 = vmatpush1.msra.mxu0 0.0
  %229 = vmatprep.subr.mxu0 0.0
  %230 = vmatpush1.msra.mxu0 0.0
  %231 = vmatprep.subr.mxu0 0.0
  %232 = vmatpush1.msra.mxu0 0.0
  %233 = vmatprep.subr.mxu0 0.0
  %234 = vmatpush1.msra.mxu0 0.0
  %235 = vmatprep.subr.mxu0 0.0
  %236 = vmatpush1.msra.mxu0 0.0
  %237 = vmatprep.subr.mxu0 0.0
  %238 = vmatpush1.msra.mxu0 0.0
  %239 = vmatprep.subr.mxu0 0.0
  %240 = vmatpush1.msra.mxu0 0.0
  %241 = vmatprep.subr.mxu0 0.0
  %242 = vmatpush1.msra.mxu0 0.0
  %243 = vmatprep.mubr.f32.mxu0 0.0
  %244 = vmatmul.mubr.f32.gmra.mrb[0].mxu0 %v177
  %v245 = vpop.f32.mrb[0].mxu0
  %v246 = vadd.f32 0.0, %v245
  %v247 = vpop.f32.mrb[0].mxu0
  %248 = vdwg.mxu0
  %v249 = vadd.f32 %v134, %v246
  %v250 = vxor.u32 %v249, 2147483648
  %v251 = vmul.f32 %v250, 1.442695
  %v252 = vpow.pop %v251
  %v253 = vadd.f32 %v252, 1.0
  %v254 = vrcp.pop %v253
  %v255 = vmul.f32 1.0, %v254
  %v256 = vtanh.pop %v249
  %v257 = vmul.f32 %v255, 0.0
  %259 = vrot.lane.b32.xlu0 %v256, 64
  %v260 = vpop.permute.xlu0 %259
  %v262 = vmul.f32 %v255, %v260
  %264 = vrot.lane.b32.xlu0 %v262, 32
  %v265 = vpop.permute.xlu0 %264
  %v267 = vadd.f32 %v257, %v265
  %v268 = vtanh.pop %v267
  %270 = vrot.lane.b32.xlu0 %v268, 64
  %v271 = vpop.permute.xlu0 %270
  %v273 = vmul.f32 %v255, %v271
  %275 = vrot.lane.b32.xlu0 %v273, 32
  %v276 = vpop.permute.xlu0 %275
  %278 = vst.msk [vmem:[#allocation2] sm:$0xff] %vm42, %v276
  %v279 = vsel %vm42, %v276, 0
  %281 = vmatprep.subr.mxu0 0.0
  %282 = vmatpush1.msra.mxu0 %v172
  %283 = vmatprep.subr.mxu0 0.0
  %284 = vmatpush1.msra.mxu0 %v173
  %285 = vmatprep.subr.mxu0 0.0
  %286 = vmatpush1.msra.mxu0 %v174
  %287 = vmatprep.subr.mxu0 0.0
  %288 = vmatpush1.msra.mxu0 %v175
  %289 = vmatprep.subr.mxu0 0.0
  %290 = vmatpush1.msra.mxu0 0.0
  %291 = vmatprep.subr.mxu0 0.0
  %292 = vmatpush1.msra.mxu0 0.0
  %293 = vmatprep.subr.mxu0 0.0
  %294 = vmatpush1.msra.mxu0 0.0
  %295 = vmatprep.subr.mxu0 0.0
  %296 = vmatpush1.msra.mxu0 0.0
  %297 = vmatprep.subr.mxu0 0.0
  %298 = vmatpush1.msra.mxu0 0.0
  %299 = vmatprep.subr.mxu0 0.0
  %300 = vmatpush1.msra.mxu0 0.0
  %301 = vmatprep.subr.mxu0 0.0
  %302 = vmatpush1.msra.mxu0 0.0
  %303 = vmatprep.subr.mxu0 0.0
  %304 = vmatpush1.msra.mxu0 0.0
  %305 = vmatprep.subr.mxu0 0.0
  %306 = vmatpush1.msra.mxu0 0.0
  %307 = vmatprep.subr.mxu0 0.0
  %308 = vmatpush1.msra.mxu0 0.0
  %309 = vmatprep.subr.mxu0 0.0
  %310 = vmatpush1.msra.mxu0 0.0
  %311 = vmatprep.subr.mxu0 0.0
  %312 = vmatpush1.msra.mxu0 0.0
  %313 = vmatprep.subr.mxu0 0.0
  %314 = vmatpush1.msra.mxu0 0.0
  %315 = vmatprep.subr.mxu0 0.0
  %316 = vmatpush1.msra.mxu0 0.0
  %317 = vmatprep.subr.mxu0 0.0
  %318 = vmatpush1.msra.mxu0 0.0
  %319 = vmatprep.subr.mxu0 0.0
  %320 = vmatpush1.msra.mxu0 0.0
  %321 = vmatprep.subr.mxu0 0.0
  %322 = vmatpush1.msra.mxu0 0.0
  %323 = vmatprep.subr.mxu0 0.0
  %324 = vmatpush1.msra.mxu0 0.0
  %325 = vmatprep.subr.mxu0 0.0
  %326 = vmatpush1.msra.mxu0 0.0
  %327 = vmatprep.subr.mxu0 0.0
  %328 = vmatpush1.msra.mxu0 0.0
  %329 = vmatprep.subr.mxu0 0.0
  %330 = vmatpush1.msra.mxu0 0.0
  %331 = vmatprep.subr.mxu0 0.0
  %332 = vmatpush1.msra.mxu0 0.0
  %333 = vmatprep.subr.mxu0 0.0
  %334 = vmatpush1.msra.mxu0 0.0
  %335 = vmatprep.subr.mxu0 0.0
  %336 = vmatpush1.msra.mxu0 0.0
  %337 = vmatprep.subr.mxu0 0.0
  %338 = vmatpush1.msra.mxu0 0.0
  %339 = vmatprep.subr.mxu0 0.0
  %340 = vmatpush1.msra.mxu0 0.0
  %341 = vmatprep.subr.mxu0 0.0
  %342 = vmatpush1.msra.mxu0 0.0
  %343 = vmatprep.subr.mxu0 0.0
  %344 = vmatpush1.msra.mxu0 0.0
  %345 = vmatprep.mubr.f32.mxu0 0.0
  %346 = vmatmul.mubr.f32.gmra.mrb[0].mxu0 %v279
  %v347 = vpop.f32.mrb[0].mxu0
  %v348 = vadd.f32 0.0, %v347
  %v349 = vpop.f32.mrb[0].mxu0
  %350 = vdwg.mxu0
  %v351 = vadd.f32 %v139, %v348
  %v352 = vxor.u32 %v351, 2147483648
  %v353 = vmul.f32 %v352, 1.442695
  %v354 = vpow.pop %v353
  %v355 = vadd.f32 %v354, 1.0
  %v356 = vrcp.pop %v355
  %v357 = vmul.f32 1.0, %v356
  %v358 = vtanh.pop %v351
  %v359 = vmul.f32 %v357, %v267
  %361 = vrot.lane.b32.xlu0 %v358, 64
  %v362 = vpop.permute.xlu0 %361
  %v364 = vmul.f32 %v357, %v362
  %366 = vrot.lane.b32.xlu0 %v364, 32
  %v367 = vpop.permute.xlu0 %366
  %v369 = vadd.f32 %v359, %v367
  %v370 = vtanh.pop %v369
  %372 = vrot.lane.b32.xlu0 %v370, 64
  %v373 = vpop.permute.xlu0 %372
  %v375 = vmul.f32 %v357, %v373
  %377 = vrot.lane.b32.xlu0 %v375, 32
  %v378 = vpop.permute.xlu0 %377
  %380 = vst.msk [vmem:[#allocation2 + $0x8] sm:$0xff] %vm42, %v378
  %v381 = vsel %vm42, %v378, 0
  %383 = vmatprep.subr.mxu0 0.0
  %384 = vmatpush1.msra.mxu0 %v172
  %385 = vmatprep.subr.mxu0 0.0
  %386 = vmatpush1.msra.mxu0 %v173
  %387 = vmatprep.subr.mxu0 0.0
  %388 = vmatpush1.msra.mxu0 %v174
  %389 = vmatprep.subr.mxu0 0.0
  %390 = vmatpush1.msra.mxu0 %v175
  %391 = vmatprep.subr.mxu0 0.0
  %392 = vmatpush1.msra.mxu0 0.0
  %393 = vmatprep.subr.mxu0 0.0
  %394 = vmatpush1.msra.mxu0 0.0
  %395 = vmatprep.subr.mxu0 0.0
  %396 = vmatpush1.msra.mxu0 0.0
  %397 = vmatprep.subr.mxu0 0.0
  %398 = vmatpush1.msra.mxu0 0.0
  %399 = vmatprep.subr.mxu0 0.0
  %400 = vmatpush1.msra.mxu0 0.0
  %401 = vmatprep.subr.mxu0 0.0
  %402 = vmatpush1.msra.mxu0 0.0
  %403 = vmatprep.subr.mxu0 0.0
  %404 = vmatpush1.msra.mxu0 0.0
  %405 = vmatprep.subr.mxu0 0.0
  %406 = vmatpush1.msra.mxu0 0.0
  %407 = vmatprep.subr.mxu0 0.0
  %408 = vmatpush1.msra.mxu0 0.0
  %409 = vmatprep.subr.mxu0 0.0
  %410 = vmatpush1.msra.mxu0 0.0
  %411 = vmatprep.subr.mxu0 0.0
  %412 = vmatpush1.msra.mxu0 0.0
  %413 = vmatprep.subr.mxu0 0.0
  %414 = vmatpush1.msra.mxu0 0.0
  %415 = vmatprep.subr.mxu0 0.0
  %416 = vmatpush1.msra.mxu0 0.0
  %417 = vmatprep.subr.mxu0 0.0
  %418 = vmatpush1.msra.mxu0 0.0
  %419 = vmatprep.subr.mxu0 0.0
  %420 = vmatpush1.msra.mxu0 0.0
  %421 = vmatprep.subr.mxu0 0.0
  %422 = vmatpush1.msra.mxu0 0.0
  %423 = vmatprep.subr.mxu0 0.0
  %424 = vmatpush1.msra.mxu0 0.0
  %425 = vmatprep.subr.mxu0 0.0
  %426 = vmatpush1.msra.mxu0 0.0
  %427 = vmatprep.subr.mxu0 0.0
  %428 = vmatpush1.msra.mxu0 0.0
  %429 = vmatprep.subr.mxu0 0.0
  %430 = vmatpush1.msra.mxu0 0.0
  %431 = vmatprep.subr.mxu0 0.0
  %432 = vmatpush1.msra.mxu0 0.0
  %433 = vmatprep.subr.mxu0 0.0
  %434 = vmatpush1.msra.mxu0 0.0
  %435 = vmatprep.subr.mxu0 0.0
  %436 = vmatpush1.msra.mxu0 0.0
  %437 = vmatprep.subr.mxu0 0.0
  %438 = vmatpush1.msra.mxu0 0.0
  %439 = vmatprep.subr.mxu0 0.0
  %440 = vmatpush1.msra.mxu0 0.0
  %441 = vmatprep.subr.mxu0 0.0
  %442 = vmatpush1.msra.mxu0 0.0
  %443 = vmatprep.subr.mxu0 0.0
  %444 = vmatpush1.msra.mxu0 0.0
  %445 = vmatprep.subr.mxu0 0.0
  %446 = vmatpush1.msra.mxu0 0.0
  %447 = vmatprep.mubr.f32.mxu0 0.0
  %448 = vmatmul.mubr.f32.gmra.mrb[0].mxu0 %v381
  %v449 = vpop.f32.mrb[0].mxu0
  %v450 = vadd.f32 0.0, %v449
  %v451 = vpop.f32.mrb[0].mxu0
  %452 = vdwg.mxu0
  %v453 = vadd.f32 %v144, %v450
  %v454 = vxor.u32 %v453, 2147483648
  %v455 = vmul.f32 %v454, 1.442695
  %v456 = vpow.pop %v455
  %v457 = vadd.f32 %v456, 1.0
  %v458 = vrcp.pop %v457
  %v459 = vmul.f32 1.0, %v458
  %v460 = vtanh.pop %v453
  %v461 = vmul.f32 %v459, %v369
  %463 = vrot.lane.b32.xlu0 %v460, 64
  %v464 = vpop.permute.xlu0 %463
  %v466 = vmul.f32 %v459, %v464
  %468 = vrot.lane.b32.xlu0 %v466, 32
  %v469 = vpop.permute.xlu0 %468
  %v471 = vadd.f32 %v461, %v469
  %v472 = vtanh.pop %v471
  %474 = vrot.lane.b32.xlu0 %v472, 64
  %v475 = vpop.permute.xlu0 %474
  %v477 = vmul.f32 %v459, %v475
  %479 = vrot.lane.b32.xlu0 %v477, 32
  %v480 = vpop.permute.xlu0 %479
  %482 = vst.msk [vmem:[#allocation2 + $0x10] sm:$0xff] %vm42, %v480
  %v483 = vsel %vm42, %v480, 0
  %485 = vmatprep.subr.mxu0 0.0
  %486 = vmatpush1.msra.mxu0 %v172
  %487 = vmatprep.subr.mxu0 0.0
  %488 = vmatpush1.msra.mxu0 %v173
  %489 = vmatprep.subr.mxu0 0.0
  %490 = vmatpush1.msra.mxu0 %v174
  %491 = vmatprep.subr.mxu0 0.0
  %492 = vmatpush1.msra.mxu0 %v175
  %493 = vmatprep.subr.mxu0 0.0
  %494 = vmatpush1.msra.mxu0 0.0
  %495 = vmatprep.subr.mxu0 0.0
  %496 = vmatpush1.msra.mxu0 0.0
  %497 = vmatprep.subr.mxu0 0.0
  %498 = vmatpush1.msra.mxu0 0.0
  %499 = vmatprep.subr.mxu0 0.0
  %500 = vmatpush1.msra.mxu0 0.0
  %501 = vmatprep.subr.mxu0 0.0
  %502 = vmatpush1.msra.mxu0 0.0
  %503 = vmatprep.subr.mxu0 0.0
  %504 = vmatpush1.msra.mxu0 0.0
  %505 = vmatprep.subr.mxu0 0.0
  %506 = vmatpush1.msra.mxu0 0.0
  %507 = vmatprep.subr.mxu0 0.0
  %508 = vmatpush1.msra.mxu0 0.0
  %509 = vmatprep.subr.mxu0 0.0
  %510 = vmatpush1.msra.mxu0 0.0
  %511 = vmatprep.subr.mxu0 0.0
  %512 = vmatpush1.msra.mxu0 0.0
  %513 = vmatprep.subr.mxu0 0.0
  %514 = vmatpush1.msra.mxu0 0.0
  %515 = vmatprep.subr.mxu0 0.0
  %516 = vmatpush1.msra.mxu0 0.0
  %517 = vmatprep.subr.mxu0 0.0
  %518 = vmatpush1.msra.mxu0 0.0
  %519 = vmatprep.subr.mxu0 0.0
  %520 = vmatpush1.msra.mxu0 0.0
  %521 = vmatprep.subr.mxu0 0.0
  %522 = vmatpush1.msra.mxu0 0.0
  %523 = vmatprep.subr.mxu0 0.0
  %524 = vmatpush1.msra.mxu0 0.0
  %525 = vmatprep.subr.mxu0 0.0
  %526 = vmatpush1.msra.mxu0 0.0
  %527 = vmatprep.subr.mxu0 0.0
  %528 = vmatpush1.msra.mxu0 0.0
  %529 = vmatprep.subr.mxu0 0.0
  %530 = vmatpush1.msra.mxu0 0.0
  %531 = vmatprep.subr.mxu0 0.0
  %532 = vmatpush1.msra.mxu0 0.0
  %533 = vmatprep.subr.mxu0 0.0
  %534 = vmatpush1.msra.mxu0 0.0
  %535 = vmatprep.subr.mxu0 0.0
  %536 = vmatpush1.msra.mxu0 0.0
  %537 = vmatprep.subr.mxu0 0.0
  %538 = vmatpush1.msra.mxu0 0.0
  %539 = vmatprep.subr.mxu0 0.0
  %540 = vmatpush1.msra.mxu0 0.0
  %541 = vmatprep.subr.mxu0 0.0
  %542 = vmatpush1.msra.mxu0 0.0
  %543 = vmatprep.subr.mxu0 0.0
  %544 = vmatpush1.msra.mxu0 0.0
  %545 = vmatprep.subr.mxu0 0.0
  %546 = vmatpush1.msra.mxu0 0.0
  %547 = vmatprep.subr.mxu0 0.0
  %548 = vmatpush1.msra.mxu0 0.0
  %549 = vmatprep.mubr.f32.mxu0 0.0
  %550 = vmatmul.mubr.f32.gmra.mrb[0].mxu0 %v483
  %v551 = vpop.f32.mrb[0].mxu0
  %v552 = vadd.f32 0.0, %v551
  %v553 = vpop.f32.mrb[0].mxu0
  %554 = vdwg.mxu0
  %v555 = vadd.f32 %v149, %v552
  %v556 = vxor.u32 %v555, 2147483648
  %v557 = vmul.f32 %v556, 1.442695
  %v558 = vpow.pop %v557
  %v559 = vadd.f32 %v558, 1.0
  %v560 = vrcp.pop %v559
  %v561 = vmul.f32 1.0, %v560
  %v562 = vtanh.pop %v555
  %v563 = vmul.f32 %v561, %v471
  %565 = vrot.lane.b32.xlu0 %v562, 64
  %v566 = vpop.permute.xlu0 %565
  %v568 = vmul.f32 %v561, %v566
  %570 = vrot.lane.b32.xlu0 %v568, 32
  %v571 = vpop.permute.xlu0 %570
  %v573 = vadd.f32 %v563, %v571
  %v574 = vtanh.pop %v573
  %576 = vrot.lane.b32.xlu0 %v574, 64
  %v577 = vpop.permute.xlu0 %576
  %v579 = vmul.f32 %v561, %v577
  %581 = vrot.lane.b32.xlu0 %v579, 32
  %v582 = vpop.permute.xlu0 %581
  %584 = vst.msk [vmem:[#allocation2 + $0x18] sm:$0xff] %vm42, %v582
  %v585 = vsel %vm42, %v582, 0
  %587 = vmatprep.subr.mxu0 0.0
  %588 = vmatpush1.msra.mxu0 %v172
  %589 = vmatprep.subr.mxu0 0.0
  %590 = vmatpush1.msra.mxu0 %v173
  %591 = vmatprep.subr.mxu0 0.0
  %592 = vmatpush1.msra.mxu0 %v174
  %593 = vmatprep.subr.mxu0 0.0
  %594 = vmatpush1.msra.mxu0 %v175
  %595 = vmatprep.subr.mxu0 0.0
  %596 = vmatpush1.msra.mxu0 0.0
  %597 = vmatprep.subr.mxu0 0.0
  %598 = vmatpush1.msra.mxu0 0.0
  %599 = vmatprep.subr.mxu0 0.0
  %600 = vmatpush1.msra.mxu0 0.0
  %601 = vmatprep.subr.mxu0 0.0
  %602 = vmatpush1.msra.mxu0 0.0
  %603 = vmatprep.subr.mxu0 0.0
  %604 = vmatpush1.msra.mxu0 0.0
  %605 = vmatprep.subr.mxu0 0.0
  %606 = vmatpush1.msra.mxu0 0.0
  %607 = vmatprep.subr.mxu0 0.0
  %608 = vmatpush1.msra.mxu0 0.0
  %609 = vmatprep.subr.mxu0 0.0
  %610 = vmatpush1.msra.mxu0 0.0
  %611 = vmatprep.subr.mxu0 0.0
  %612 = vmatpush1.msra.mxu0 0.0
  %613 = vmatprep.subr.mxu0 0.0
  %614 = vmatpush1.msra.mxu0 0.0
  %615 = vmatprep.subr.mxu0 0.0
  %616 = vmatpush1.msra.mxu0 0.0
  %617 = vmatprep.subr.mxu0 0.0
  %618 = vmatpush1.msra.mxu0 0.0
  %619 = vmatprep.subr.mxu0 0.0
  %620 = vmatpush1.msra.mxu0 0.0
  %621 = vmatprep.subr.mxu0 0.0
  %622 = vmatpush1.msra.mxu0 0.0
  %623 = vmatprep.subr.mxu0 0.0
  %624 = vmatpush1.msra.mxu0 0.0
  %625 = vmatprep.subr.mxu0 0.0
  %626 = vmatpush1.msra.mxu0 0.0
  %627 = vmatprep.subr.mxu0 0.0
  %628 = vmatpush1.msra.mxu0 0.0
  %629 = vmatprep.subr.mxu0 0.0
  %630 = vmatpush1.msra.mxu0 0.0
  %631 = vmatprep.subr.mxu0 0.0
  %632 = vmatpush1.msra.mxu0 0.0
  %633 = vmatprep.subr.mxu0 0.0
  %634 = vmatpush1.msra.mxu0 0.0
  %635 = vmatprep.subr.mxu0 0.0
  %636 = vmatpush1.msra.mxu0 0.0
  %637 = vmatprep.subr.mxu0 0.0
  %638 = vmatpush1.msra.mxu0 0.0
  %639 = vmatprep.subr.mxu0 0.0
  %640 = vmatpush1.msra.mxu0 0.0
  %641 = vmatprep.subr.mxu0 0.0
  %642 = vmatpush1.msra.mxu0 0.0
  %643 = vmatprep.subr.mxu0 0.0
  %644 = vmatpush1.msra.mxu0 0.0
  %645 = vmatprep.subr.mxu0 0.0
  %646 = vmatpush1.msra.mxu0 0.0
  %647 = vmatprep.subr.mxu0 0.0
  %648 = vmatpush1.msra.mxu0 0.0
  %649 = vmatprep.subr.mxu0 0.0
  %650 = vmatpush1.msra.mxu0 0.0
  %651 = vmatprep.mubr.f32.mxu0 0.0
  %652 = vmatmul.mubr.f32.gmra.mrb[0].mxu0 %v585
  %v653 = vpop.f32.mrb[0].mxu0
  %v654 = vadd.f32 0.0, %v653
  %v655 = vpop.f32.mrb[0].mxu0
  %656 = vdwg.mxu0
  %v657 = vadd.f32 %v154, %v654
  %v658 = vxor.u32 %v657, 2147483648
  %v659 = vmul.f32 %v658, 1.442695
  %v660 = vpow.pop %v659
  %v661 = vadd.f32 %v660, 1.0
  %v662 = vrcp.pop %v661
  %v663 = vmul.f32 1.0, %v662
  %v664 = vtanh.pop %v657
  %v665 = vmul.f32 %v663, %v573
  %667 = vrot.lane.b32.xlu0 %v664, 64
  %v668 = vpop.permute.xlu0 %667
  %v670 = vmul.f32 %v663, %v668
  %672 = vrot.lane.b32.xlu0 %v670, 32
  %v673 = vpop.permute.xlu0 %672
  %v675 = vadd.f32 %v665, %v673
  %v676 = vtanh.pop %v675
  %678 = vrot.lane.b32.xlu0 %v676, 64
  %v679 = vpop.permute.xlu0 %678
  %v681 = vmul.f32 %v663, %v679
  %683 = vrot.lane.b32.xlu0 %v681, 32
  %v684 = vpop.permute.xlu0 %683
  %686 = vst.msk [vmem:[#allocation2 + $0x20] sm:$0xff] %vm42, %v684
  %v687 = vsel %vm42, %v684, 0
  %689 = vmatprep.subr.mxu0 0.0
  %690 = vmatpush1.msra.mxu0 %v172
  %691 = vmatprep.subr.mxu0 0.0
  %692 = vmatpush1.msra.mxu0 %v173
  %693 = vmatprep.subr.mxu0 0.0
  %694 = vmatpush1.msra.mxu0 %v174
  %695 = vmatprep.subr.mxu0 0.0
  %696 = vmatpush1.msra.mxu0 %v175
  %697 = vmatprep.subr.mxu0 0.0
  %698 = vmatpush1.msra.mxu0 0.0
  %699 = vmatprep.subr.mxu0 0.0
  %700 = vmatpush1.msra.mxu0 0.0
  %701 = vmatprep.subr.mxu0 0.0
  %702 = vmatpush1.msra.mxu0 0.0
  %703 = vmatprep.subr.mxu0 0.0
  %704 = vmatpush1.msra.mxu0 0.0
  %705 = vmatprep.subr.mxu0 0.0
  %706 = vmatpush1.msra.mxu0 0.0
  %707 = vmatprep.subr.mxu0 0.0
  %708 = vmatpush1.msra.mxu0 0.0
  %709 = vmatprep.subr.mxu0 0.0
  %710 = vmatpush1.msra.mxu0 0.0
  %711 = vmatprep.subr.mxu0 0.0
  %712 = vmatpush1.msra.mxu0 0.0
  %713 = vmatprep.subr.mxu0 0.0
  %714 = vmatpush1.msra.mxu0 0.0
  %715 = vmatprep.subr.mxu0 0.0
  %716 = vmatpush1.msra.mxu0 0.0
  %717 = vmatprep.subr.mxu0 0.0
  %718 = vmatpush1.msra.mxu0 0.0
  %719 = vmatprep.subr.mxu0 0.0
  %720 = vmatpush1.msra.mxu0 0.0
  %721 = vmatprep.subr.mxu0 0.0
  %722 = vmatpush1.msra.mxu0 0.0
  %723 = vmatprep.subr.mxu0 0.0
  %724 = vmatpush1.msra.mxu0 0.0
  %725 = vmatprep.subr.mxu0 0.0
  %726 = vmatpush1.msra.mxu0 0.0
  %727 = vmatprep.subr.mxu0 0.0
  %728 = vmatpush1.msra.mxu0 0.0
  %729 = vmatprep.subr.mxu0 0.0
  %730 = vmatpush1.msra.mxu0 0.0
  %731 = vmatprep.subr.mxu0 0.0
  %732 = vmatpush1.msra.mxu0 0.0
  %733 = vmatprep.subr.mxu0 0.0
  %734 = vmatpush1.msra.mxu0 0.0
  %735 = vmatprep.subr.mxu0 0.0
  %736 = vmatpush1.msra.mxu0 0.0
  %737 = vmatprep.subr.mxu0 0.0
  %738 = vmatpush1.msra.mxu0 0.0
  %739 = vmatprep.subr.mxu0 0.0
  %740 = vmatpush1.msra.mxu0 0.0
  %741 = vmatprep.subr.mxu0 0.0
  %742 = vmatpush1.msra.mxu0 0.0
  %743 = vmatprep.subr.mxu0 0.0
  %744 = vmatpush1.msra.mxu0 0.0
  %745 = vmatprep.subr.mxu0 0.0
  %746 = vmatpush1.msra.mxu0 0.0
  %747 = vmatprep.subr.mxu0 0.0
  %748 = vmatpush1.msra.mxu0 0.0
  %749 = vmatprep.subr.mxu0 0.0
  %750 = vmatpush1.msra.mxu0 0.0
  %751 = vmatprep.subr.mxu0 0.0
  %752 = vmatpush1.msra.mxu0 0.0
  %753 = vmatprep.mubr.f32.mxu0 0.0
  %754 = vmatmul.mubr.f32.gmra.mrb[0].mxu0 %v687
  %v755 = vpop.f32.mrb[0].mxu0
  %v756 = vadd.f32 0.0, %v755
  %v757 = vpop.f32.mrb[0].mxu0
  %758 = vdwg.mxu0
  %v759 = vadd.f32 %v159, %v756
  %v760 = vxor.u32 %v759, 2147483648
  %v761 = vmul.f32 %v760, 1.442695
  %v762 = vpow.pop %v761
  %v763 = vadd.f32 %v762, 1.0
  %v764 = vrcp.pop %v763
  %v765 = vmul.f32 1.0, %v764
  %v766 = vtanh.pop %v759
  %v767 = vmul.f32 %v765, %v675
  %769 = vrot.lane.b32.xlu0 %v766, 64
  %v770 = vpop.permute.xlu0 %769
  %v772 = vmul.f32 %v765, %v770
  %774 = vrot.lane.b32.xlu0 %v772, 32
  %v775 = vpop.permute.xlu0 %774
  %v777 = vadd.f32 %v767, %v775
  %v778 = vtanh.pop %v777
  %780 = vrot.lane.b32.xlu0 %v778, 64
  %v781 = vpop.permute.xlu0 %780
  %v783 = vmul.f32 %v765, %v781
  %785 = vrot.lane.b32.xlu0 %v783, 32
  %v786 = vpop.permute.xlu0 %785
  %788 = vst.msk [vmem:[#allocation2 + $0x28] sm:$0xff] %vm42, %v786
  %v789 = vsel %vm42, %v786, 0
  %791 = vmatprep.subr.mxu0 0.0
  %792 = vmatpush1.msra.mxu0 %v172
  %793 = vmatprep.subr.mxu0 0.0
  %794 = vmatpush1.msra.mxu0 %v173
  %795 = vmatprep.subr.mxu0 0.0
  %796 = vmatpush1.msra.mxu0 %v174
  %797 = vmatprep.subr.mxu0 0.0
  %798 = vmatpush1.msra.mxu0 %v175
  %799 = vmatprep.subr.mxu0 0.0
  %800 = vmatpush1.msra.mxu0 0.0
  %801 = vmatprep.subr.mxu0 0.0
  %802 = vmatpush1.msra.mxu0 0.0
  %803 = vmatprep.subr.mxu0 0.0
  %804 = vmatpush1.msra.mxu0 0.0
  %805 = vmatprep.subr.mxu0 0.0
  %806 = vmatpush1.msra.mxu0 0.0
  %807 = vmatprep.subr.mxu0 0.0
  %808 = vmatpush1.msra.mxu0 0.0
  %809 = vmatprep.subr.mxu0 0.0
  %810 = vmatpush1.msra.mxu0 0.0
  %811 = vmatprep.subr.mxu0 0.0
  %812 = vmatpush1.msra.mxu0 0.0
  %813 = vmatprep.subr.mxu0 0.0
  %814 = vmatpush1.msra.mxu0 0.0
  %815 = vmatprep.subr.mxu0 0.0
  %816 = vmatpush1.msra.mxu0 0.0
  %817 = vmatprep.subr.mxu0 0.0
  %818 = vmatpush1.msra.mxu0 0.0
  %819 = vmatprep.subr.mxu0 0.0
  %820 = vmatpush1.msra.mxu0 0.0
  %821 = vmatprep.subr.mxu0 0.0
  %822 = vmatpush1.msra.mxu0 0.0
  %823 = vmatprep.subr.mxu0 0.0
  %824 = vmatpush1.msra.mxu0 0.0
  %825 = vmatprep.subr.mxu0 0.0
  %826 = vmatpush1.msra.mxu0 0.0
  %827 = vmatprep.subr.mxu0 0.0
  %828 = vmatpush1.msra.mxu0 0.0
  %829 = vmatprep.subr.mxu0 0.0
  %830 = vmatpush1.msra.mxu0 0.0
  %831 = vmatprep.subr.mxu0 0.0
  %832 = vmatpush1.msra.mxu0 0.0
  %833 = vmatprep.subr.mxu0 0.0
  %834 = vmatpush1.msra.mxu0 0.0
  %835 = vmatprep.subr.mxu0 0.0
  %836 = vmatpush1.msra.mxu0 0.0
  %837 = vmatprep.subr.mxu0 0.0
  %838 = vmatpush1.msra.mxu0 0.0
  %839 = vmatprep.subr.mxu0 0.0
  %840 = vmatpush1.msra.mxu0 0.0
  %841 = vmatprep.subr.mxu0 0.0
  %842 = vmatpush1.msra.mxu0 0.0
  %843 = vmatprep.subr.mxu0 0.0
  %844 = vmatpush1.msra.mxu0 0.0
  %845 = vmatprep.subr.mxu0 0.0
  %846 = vmatpush1.msra.mxu0 0.0
  %847 = vmatprep.subr.mxu0 0.0
  %848 = vmatpush1.msra.mxu0 0.0
  %849 = vmatprep.subr.mxu0 0.0
  %850 = vmatpush1.msra.mxu0 0.0
  %851 = vmatprep.subr.mxu0 0.0
  %852 = vmatpush1.msra.mxu0 0.0
  %853 = vmatprep.subr.mxu0 0.0
  %854 = vmatpush1.msra.mxu0 0.0
  %855 = vmatprep.mubr.f32.mxu0 0.0
  %856 = vmatmul.mubr.f32.gmra.mrb[0].mxu0 %v789
  %v857 = vpop.f32.mrb[0].mxu0
  %v858 = vadd.f32 0.0, %v857
  %v859 = vpop.f32.mrb[0].mxu0
  %860 = vdwg.mxu0
  %v861 = vadd.f32 %v164, %v858
  %v862 = vxor.u32 %v861, 2147483648
  %v863 = vmul.f32 %v862, 1.442695
  %v864 = vpow.pop %v863
  %v865 = vadd.f32 %v864, 1.0
  %v866 = vrcp.pop %v865
  %v867 = vmul.f32 1.0, %v866
  %v868 = vtanh.pop %v861
  %v869 = vmul.f32 %v867, %v777
  %871 = vrot.lane.b32.xlu0 %v868, 64
  %v872 = vpop.permute.xlu0 %871
  %v874 = vmul.f32 %v867, %v872
  %876 = vrot.lane.b32.xlu0 %v874, 32
  %v877 = vpop.permute.xlu0 %876
  %v879 = vadd.f32 %v869, %v877
  %v880 = vtanh.pop %v879
  %882 = vrot.lane.b32.xlu0 %v880, 64
  %v883 = vpop.permute.xlu0 %882
  %v885 = vmul.f32 %v867, %v883
  %887 = vrot.lane.b32.xlu0 %v885, 32
  %v888 = vpop.permute.xlu0 %887
  %890 = vst.msk [vmem:[#allocation2 + $0x30] sm:$0xff] %vm42, %v888
  %v891 = vsel %vm42, %v888, 0
  %893 = vmatprep.subr.mxu0 0.0
  %894 = vmatpush1.msra.mxu0 %v172
  %895 = vmatprep.subr.mxu0 0.0
  %896 = vmatpush1.msra.mxu0 %v173
  %897 = vmatprep.subr.mxu0 0.0
  %898 = vmatpush1.msra.mxu0 %v174
  %899 = vmatprep.subr.mxu0 0.0
  %900 = vmatpush1.msra.mxu0 %v175
  %901 = vmatprep.subr.mxu0 0.0
  %902 = vmatpush1.msra.mxu0 0.0
  %903 = vmatprep.subr.mxu0 0.0
  %904 = vmatpush1.msra.mxu0 0.0
  %905 = vmatprep.subr.mxu0 0.0
  %906 = vmatpush1.msra.mxu0 0.0
  %907 = vmatprep.subr.mxu0 0.0
  %908 = vmatpush1.msra.mxu0 0.0
  %909 = vmatprep.subr.mxu0 0.0
  %910 = vmatpush1.msra.mxu0 0.0
  %911 = vmatprep.subr.mxu0 0.0
  %912 = vmatpush1.msra.mxu0 0.0
  %913 = vmatprep.subr.mxu0 0.0
  %914 = vmatpush1.msra.mxu0 0.0
  %915 = vmatprep.subr.mxu0 0.0
  %916 = vmatpush1.msra.mxu0 0.0
  %917 = vmatprep.subr.mxu0 0.0
  %918 = vmatpush1.msra.mxu0 0.0
  %919 = vmatprep.subr.mxu0 0.0
  %920 = vmatpush1.msra.mxu0 0.0
  %921 = vmatprep.subr.mxu0 0.0
  %922 = vmatpush1.msra.mxu0 0.0
  %923 = vmatprep.subr.mxu0 0.0
  %924 = vmatpush1.msra.mxu0 0.0
  %925 = vmatprep.subr.mxu0 0.0
  %926 = vmatpush1.msra.mxu0 0.0
  %927 = vmatprep.subr.mxu0 0.0
  %928 = vmatpush1.msra.mxu0 0.0
  %929 = vmatprep.subr.mxu0 0.0
  %930 = vmatpush1.msra.mxu0 0.0
  %931 = vmatprep.subr.mxu0 0.0
  %932 = vmatpush1.msra.mxu0 0.0
  %933 = vmatprep.subr.mxu0 0.0
  %934 = vmatpush1.msra.mxu0 0.0
  %935 = vmatprep.subr.mxu0 0.0
  %936 = vmatpush1.msra.mxu0 0.0
  %937 = vmatprep.subr.mxu0 0.0
  %938 = vmatpush1.msra.mxu0 0.0
  %939 = vmatprep.subr.mxu0 0.0
  %940 = vmatpush1.msra.mxu0 0.0
  %941 = vmatprep.subr.mxu0 0.0
  %942 = vmatpush1.msra.mxu0 0.0
  %943 = vmatprep.subr.mxu0 0.0
  %944 = vmatpush1.msra.mxu0 0.0
  %945 = vmatprep.subr.mxu0 0.0
  %946 = vmatpush1.msra.mxu0 0.0
  %947 = vmatprep.subr.mxu0 0.0
  %948 = vmatpush1.msra.mxu0 0.0
  %949 = vmatprep.subr.mxu0 0.0
  %950 = vmatpush1.msra.mxu0 0.0
  %951 = vmatprep.subr.mxu0 0.0
  %952 = vmatpush1.msra.mxu0 0.0
  %953 = vmatprep.subr.mxu0 0.0
  %954 = vmatpush1.msra.mxu0 0.0
  %955 = vmatprep.subr.mxu0 0.0
  %956 = vmatpush1.msra.mxu0 0.0
  %957 = vmatprep.mubr.f32.mxu0 0.0
  %958 = vmatmul.mubr.f32.gmra.mrb[0].mxu0 %v891
  %v959 = vpop.f32.mrb[0].mxu0
  %v960 = vadd.f32 0.0, %v959
  %v961 = vpop.f32.mrb[0].mxu0
  %962 = vdwg.mxu0
  %v963 = vadd.f32 %v169, %v960
  %v964 = vxor.u32 %v963, 2147483648
  %v965 = vmul.f32 %v964, 1.442695
  %v966 = vpow.pop %v965
  %v967 = vadd.f32 %v966, 1.0
  %v968 = vrcp.pop %v967
  %v969 = vmul.f32 1.0, %v968
  %v970 = vtanh.pop %v963
  %v971 = vmul.f32 %v969, %v879
  %973 = vrot.lane.b32.xlu0 %v970, 64
  %v974 = vpop.permute.xlu0 %973
  %v976 = vmul.f32 %v969, %v974
  %978 = vrot.lane.b32.xlu0 %v976, 32
  %v979 = vpop.permute.xlu0 %978
  %v981 = vadd.f32 %v971, %v979
  %v982 = vtanh.pop %v981
  %984 = vrot.lane.b32.xlu0 %v982, 64
  %v985 = vpop.permute.xlu0 %984
  %v987 = vmul.f32 %v969, %v985
  %989 = vrot.lane.b32.xlu0 %v987, 32
  %v990 = vpop.permute.xlu0 %989
  %992 = vst.msk [vmem:[#allocation2 + $0x38] sm:$0xff] %vm42, %v990
  %v993 = vld [vmem:[#allocation2] sm:$0xff]
  %v994 = vld [vmem:[#allocation2 + $0x8] sm:$0xff]
  %v995 = vld [vmem:[#allocation2 + $0x10] sm:$0xff]
  %v996 = vld [vmem:[#allocation2 + $0x18] sm:$0xff]
  %v997 = vld [vmem:[#allocation2 + $0x20] sm:$0xff]
  %v998 = vld [vmem:[#allocation2 + $0x28] sm:$0xff]
  %v999 = vld [vmem:[#allocation2 + $0x30] sm:$0xff]
  %v1000 = vld [vmem:[#allocation2 + $0x38] sm:$0xff]
  %v1001 = vld [vmem:[%s4] sm:$0xff]
  %v1002 = vld [vmem:[%s4 + $0x8] sm:$0xff]
  %v1003 = vld [vmem:[%s4 + $0x10] sm:$0xff]
  %v1004 = vld [vmem:[%s4 + $0x18] sm:$0xff]
  %v1005 = vld [vmem:[%s5] sm:$0x1]
  %v1007 = vlaneseq
  %v1008 = vshrl.u32 %v1007, 7
  %v1009 = vsub.s32 0, %v1008
  %v1010 = vrot.slane %v1005, %v1009
  %v1013 = vsel %vm42, %v993, 0
  %v1016 = vsel %vm42, %v994, 0
  %v1019 = vsel %vm42, %v995, 0
  %v1022 = vsel %vm42, %v996, 0
  %v1025 = vsel %vm42, %v997, 0
  %v1028 = vsel %vm42, %v998, 0
  %v1031 = vsel %vm42, %v999, 0
  %v1034 = vsel %vm42, %v1000, 0
  %1036 = vmatprep.subr.mxu0 0.0
  %1037 = vmatpush1.msra.mxu0 %v1001
  %1038 = vmatprep.subr.mxu0 0.0
  %1039 = vmatpush1.msra.mxu0 %v1002
  %1040 = vmatprep.subr.mxu0 0.0
  %1041 = vmatpush1.msra.mxu0 %v1003
  %1042 = vmatprep.subr.mxu0 0.0
  %1043 = vmatpush1.msra.mxu0 %v1004
  %1044 = vmatprep.subr.mxu0 0.0
  %1045 = vmatpush1.msra.mxu0 0.0
  %1046 = vmatprep.subr.mxu0 0.0
  %1047 = vmatpush1.msra.mxu0 0.0
  %1048 = vmatprep.subr.mxu0 0.0
  %1049 = vmatpush1.msra.mxu0 0.0
  %1050 = vmatprep.subr.mxu0 0.0
  %1051 = vmatpush1.msra.mxu0 0.0
  %1052 = vmatprep.subr.mxu0 0.0
  %1053 = vmatpush1.msra.mxu0 0.0
  %1054 = vmatprep.subr.mxu0 0.0
  %1055 = vmatpush1.msra.mxu0 0.0
  %1056 = vmatprep.subr.mxu0 0.0
  %1057 = vmatpush1.msra.mxu0 0.0
  %1058 = vmatprep.subr.mxu0 0.0
  %1059 = vmatpush1.msra.mxu0 0.0
  %1060 = vmatprep.subr.mxu0 0.0
  %1061 = vmatpush1.msra.mxu0 0.0
  %1062 = vmatprep.subr.mxu0 0.0
  %1063 = vmatpush1.msra.mxu0 0.0
  %1064 = vmatprep.subr.mxu0 0.0
  %1065 = vmatpush1.msra.mxu0 0.0
  %1066 = vmatprep.subr.mxu0 0.0
  %1067 = vmatpush1.msra.mxu0 0.0
  %1068 = vmatprep.subr.mxu0 0.0
  %1069 = vmatpush1.msra.mxu0 0.0
  %1070 = vmatprep.subr.mxu0 0.0
  %1071 = vmatpush1.msra.mxu0 0.0
  %1072 = vmatprep.subr.mxu0 0.0
  %1073 = vmatpush1.msra.mxu0 0.0
  %1074 = vmatprep.subr.mxu0 0.0
  %1075 = vmatpush1.msra.mxu0 0.0
  %1076 = vmatprep.subr.mxu0 0.0
  %1077 = vmatpush1.msra.mxu0 0.0
  %1078 = vmatprep.subr.mxu0 0.0
  %1079 = vmatpush1.msra.mxu0 0.0
  %1080 = vmatprep.subr.mxu0 0.0
  %1081 = vmatpush1.msra.mxu0 0.0
  %1082 = vmatprep.subr.mxu0 0.0
  %1083 = vmatpush1.msra.mxu0 0.0
  %1084 = vmatprep.subr.mxu0 0.0
  %1085 = vmatpush1.msra.mxu0 0.0
  %1086 = vmatprep.subr.mxu0 0.0
  %1087 = vmatpush1.msra.mxu0 0.0
  %1088 = vmatprep.subr.mxu0 0.0
  %1089 = vmatpush1.msra.mxu0 0.0
  %1090 = vmatprep.subr.mxu0 0.0
  %1091 = vmatpush1.msra.mxu0 0.0
  %1092 = vmatprep.subr.mxu0 0.0
  %1093 = vmatpush1.msra.mxu0 0.0
  %1094 = vmatprep.subr.mxu0 0.0
  %1095 = vmatpush1.msra.mxu0 0.0
  %1096 = vmatprep.subr.mxu0 0.0
  %1097 = vmatpush1.msra.mxu0 0.0
  %1098 = vmatprep.subr.mxu0 0.0
  %1099 = vmatpush1.msra.mxu0 0.0
  %1100 = vmatprep.mubr.f32.mxu0 0.0
  %1101 = vmatmul.mubr.f32.gmra.mrb[0].mxu0 %v1013
  %v1102 = vpop.f32.mrb[0].mxu0
  %v1103 = vadd.f32 %v1010, %v1102
  %v1104 = vpop.f32.mrb[0].mxu0
  %1105 = vmatprep.mubr.f32.mxu0 0.0
  %1106 = vmatmul.mubr.f32.gmra.mrb[0].mxu0 %v1016
  %v1107 = vpop.f32.mrb[0].mxu0
  %v1108 = vadd.f32 %v1010, %v1107
  %v1109 = vpop.f32.mrb[0].mxu0
  %1110 = vmatprep.mubr.f32.mxu0 0.0
  %1111 = vmatmul.mubr.f32.gmra.mrb[0].mxu0 %v1019
  %v1112 = vpop.f32.mrb[0].mxu0
  %v1113 = vadd.f32 %v1010, %v1112
  %v1114 = vpop.f32.mrb[0].mxu0
  %1115 = vmatprep.mubr.f32.mxu0 0.0
  %1116 = vmatmul.mubr.f32.gmra.mrb[0].mxu0 %v1022
  %v1117 = vpop.f32.mrb[0].mxu0
  %v1118 = vadd.f32 %v1010, %v1117
  %v1119 = vpop.f32.mrb[0].mxu0
  %1120 = vmatprep.mubr.f32.mxu0 0.0
  %1121 = vmatmul.mubr.f32.gmra.mrb[0].mxu0 %v1025
  %v1122 = vpop.f32.mrb[0].mxu0
  %v1123 = vadd.f32 %v1010, %v1122
  %v1124 = vpop.f32.mrb[0].mxu0
  %1125 = vmatprep.mubr.f32.mxu0 0.0
  %1126 = vmatmul.mubr.f32.gmra.mrb[0].mxu0 %v1028
  %v1127 = vpop.f32.mrb[0].mxu0
  %v1128 = vadd.f32 %v1010, %v1127
  %v1129 = vpop.f32.mrb[0].mxu0
  %1130 = vmatprep.mubr.f32.mxu0 0.0
  %1131 = vmatmul.mubr.f32.gmra.mrb[0].mxu0 %v1031
  %v1132 = vpop.f32.mrb[0].mxu0
  %v1133 = vadd.f32 %v1010, %v1132
  %v1134 = vpop.f32.mrb[0].mxu0
  %1135 = vmatprep.mubr.f32.mxu0 0.0
  %1136 = vmatmul.mubr.f32.gmra.mrb[0].mxu0 %v1034
  %v1137 = vpop.f32.mrb[0].mxu0
  %v1138 = vadd.f32 %v1010, %v1137
  %v1139 = vpop.f32.mrb[0].mxu0
  %1140 = vdwg.mxu0
  %1141 = vst [vmem:[%s6] sm:$0xff] %v1103
  %1142 = vst [vmem:[%s6 + $0x8] sm:$0xff] %v1108
  %1143 = vst [vmem:[%s6 + $0x10] sm:$0xff] %v1113
  %1144 = vst [vmem:[%s6 + $0x18] sm:$0xff] %v1118
  %1145 = vst [vmem:[%s6 + $0x20] sm:$0xff] %v1123
  %1146 = vst [vmem:[%s6 + $0x28] sm:$0xff] %v1128
  %1147 = vst [vmem:[%s6 + $0x30] sm:$0xff] %v1133
  %1148 = vst [vmem:[%s6 + $0x38] sm:$0xff] %v1138
  // Predicated region
  $region26: #{decoder_rnn_forward.1} parent=0 // pred_check
    _
  $region27: #{decoder_rnn_forward.1} parent=0 // pred_check_branch
    %1150 = sbr.rel (0) target = $region29
  $region28: #{decoder_rnn_forward.1} parent=0 // pred_region
    _
  $region29: #{decoder_rnn_forward.1} parent=0 // pred_fallthru
    _
  // Predicated region
  $region30: #{decoder_rnn_forward.1} parent=0 // pred_check
    _
  $region31: #{decoder_rnn_forward.1} parent=0 // pred_check_branch
    %1152 = sbr.rel (0) target = $region33
  $region32: #{decoder_rnn_forward.1} parent=0 // pred_region
    _
  $region33: #{decoder_rnn_forward.1} parent=0 // pred_fallthru
    _

</llo_original>
